<compile_context>
chip_gen: v7x
topology: tpu7x:2x2x1
jax: 0.10.0
libtpu: 0.0.40
codegen_flags: <defaults>
</compile_context>

<pallas_src>
import collections
import functools

import jax
import jax.numpy as jnp
from jax.experimental import pallas as pl
from jax.experimental.pallas import tpu as pltpu


# ----------------------------- in-kernel helpers -----------------------------

def _layernorm(x, g, b, eps=1e-12):
    mu = jnp.mean(x, axis=-1, keepdims=True)
    var = jnp.mean((x - mu) ** 2, axis=-1, keepdims=True)
    return (x - mu) * jax.lax.rsqrt(var + eps) * g + b


# ------------------------- hardware probes / config --------------------------

def _probe_compiles(build_fn):
    """True iff the pallas_call produced by build_fn compiles on this backend."""
    try:
        fn, args = build_fn()
        jax.jit(fn).lower(*args).compile()
        return True
    except Exception:
        return False


@functools.lru_cache(maxsize=None)
def _single_buffer_weights_supported():
    """Does this jax build accept pl.Buffered(1) (single-buffered const blocks)?"""
    def build():
        def k(x_ref, o_ref):
            o_ref[...] = x_ref[...] * 2.0
        fn = pl.pallas_call(
            k,
            out_shape=jax.ShapeDtypeStruct((16, 128), jnp.float32),
            grid=(2,),
            in_specs=[pl.BlockSpec((8, 128), lambda i: (0, 0),
                                   pipeline_mode=pl.Buffered(1))],
            out_specs=pl.BlockSpec((8, 128), lambda i: (i, 0)),
        )
        return fn, (jnp.zeros((8, 128), jnp.float32),)
    return _probe_compiles(build)


@functools.lru_cache(maxsize=None)
def _bf16_eup_lowering_ok():
    """Do bf16 exp / tanh-GELU lower cleanly on this backend?"""
    def build():
        def k(x_ref, o_ref):
            xb = x_ref[...].astype(jnp.bfloat16)
            o_ref[...] = (jnp.exp(xb)
                          + jax.nn.gelu(xb, approximate=True)).astype(jnp.float32)
        fn = pl.pallas_call(k, out_shape=jax.ShapeDtypeStruct((8, 128), jnp.float32))
        return fn, (jnp.zeros((8, 128), jnp.float32),)
    return _probe_compiles(build)


_HWConfig = collections.namedtuple(
    "_HWConfig",
    ["single_buffer_weights", "bf16_eup", "vmem_limit_bytes", "wide_mxu"])


@functools.lru_cache(maxsize=None)
def _hw_config():
    try:
        kind = jax.devices()[0].device_kind.lower()
    except Exception:
        kind = ""
    # v6e / v7x: 256-wide MXU + bf16 EUP.  v5e and older: 128-wide, no bf16 EUP.
    old_gen = any(tag in kind for tag in ("v2", "v3", "v4", "v5"))
    wide_mxu = not old_gen

    try:
        vmem_cap = int(pltpu.get_tpu_info().vmem_capacity_bytes)
    except Exception:
        vmem_cap = 64 * 1024 * 1024            # assume the smallest (v7x) part
    # ~60% of physical VMEM: ~38 MiB on 64 MiB parts (v7x), ~77 MiB on 128 MiB
    # parts (v5e/v6e).  Leaves headroom for the double-buffered activation
    # blocks, the QKV scratch and compiler-internal scratch.
    vmem_limit = max(32 * 1024 * 1024,
                     min(int(vmem_cap * 0.6), 96 * 1024 * 1024))

    return _HWConfig(
        single_buffer_weights=_single_buffer_weights_supported(),
        bf16_eup=(wide_mxu and _bf16_eup_lowering_ok()),
        vmem_limit_bytes=vmem_limit,
        wide_mxu=wide_mxu,
    )


# ------------------------------ Pallas kernel ---------------------------------

def _encoder_layer_kernel(x_ref, mask_ref,
                          wqkv_ref, bqkv_ref, wo_ref, bo_ref,
                          ln1g_ref, ln1b_ref,
                          w1_ref, b1_ref, w2_ref, b2_ref,
                          ln2g_ref, ln2b_ref,
                          o_ref, qkv_ref, *, num_heads, q_tile, bf16_eup):
    qt = pl.program_id(1)
    S = x_ref.shape[1]
    H = x_ref.shape[2]
    dh = H // num_heads
    scale = 1.0 / (dh ** 0.5)

    # ---- Fused Q/K/V projection for the whole sequence, once per batch
    # ---- element (qt == 0).  Cached head-major (bf16) in VMEM scratch via
    # ---- short unrolled per-head lane slices (no sublane transposes).
    @pl.when(qt == 0)
    def _():
        x_all = x_ref[0]                                            # (S, H) bf16
        qkv = jnp.dot(x_all, wqkv_ref[...],
                      preferred_element_type=jnp.float32) + bqkv_ref[...]  # (S,3H)
        for h in range(num_heads):
            lo = h * dh
            # Softmax scale folded into Q once per batch element.
            qkv_ref[0, h] = (qkv[:, lo:lo + dh] * scale).astype(jnp.bfloat16)
            qkv_ref[1, h] = qkv[:, H + lo:H + lo + dh].astype(jnp.bfloat16)
            qkv_ref[2, h] = qkv[:, 2 * H + lo:2 * H + lo + dh].astype(jnp.bfloat16)

    # ---- Attention for this query tile (heads batched on the MXU).
    q_start = pl.multiple_of(qt * q_tile, q_tile)
    qh = qkv_ref[0, :, pl.ds(q_start, q_tile), :]                   # (nh, TQ, dh)
    kh = qkv_ref[1]                                                 # (nh, S,  dh)

    s = jnp.einsum('hqd,hkd->hqk', qh, kh,
                   preferred_element_type=jnp.float32)              # (nh, TQ, S)
    s = s + mask_ref[0]                                             # (1, S) mask
    s = s - jnp.max(s, axis=-1, keepdims=True)
    # exp on the EUP: bf16 on v6e/v7x (2x throughput), f32 on v5e.
    p = jnp.exp(s.astype(jnp.bfloat16)) if bf16_eup else jnp.exp(s)
    denom = jnp.sum(p.astype(jnp.float32), axis=-1, keepdims=True)  # (nh, TQ, 1)
    p = p.astype(jnp.bfloat16)

    # Deferred softmax normalization: applied to the (TQ, dh) per-head context
    # (nh*TQ*dh elements) instead of the (nh, TQ, S) probability tensor.
    inv = pl.reciprocal(denom, approx=True)                         # (nh, TQ, 1)
    # Per-head PV matmuls lane-concatenated straight into the lane-dense
    # (TQ, H) context — same MXU passes as the batched einsum, but no sublane
    # swapaxes of the result.
    ctx = jnp.concatenate(
        [jnp.dot(p[h], qkv_ref[2, h],
                 preferred_element_type=jnp.float32) * inv[h]
         for h in range(num_heads)], axis=-1)                       # (TQ, H) f32

    xq = x_ref[0, pl.ds(q_start, q_tile), :]                        # (TQ, H) bf16
    attn = jnp.dot(ctx.astype(jnp.bfloat16), wo_ref[...],
                   preferred_element_type=jnp.float32) + bo_ref[...]
    h1 = _layernorm(xq.astype(jnp.float32) + attn, ln1g_ref[...], ln1b_ref[...])

    # ---- feed-forward
    ff = jnp.dot(h1.astype(jnp.bfloat16), w1_ref[...],
                 preferred_element_type=jnp.float32) + b1_ref[...]
    # TODO(synk): HF BERT default is the erf-based GELU; tanh approximation is
    # used here (guaranteed Mosaic lowering), small numeric difference.
    ff = jax.nn.gelu(ff.astype(jnp.bfloat16) if bf16_eup else ff,
                     approximate=True)
    ff = jnp.dot(ff.astype(jnp.bfloat16), w2_ref[...],
                 preferred_element_type=jnp.float32) + b2_ref[...]

    o_ref[0] = _layernorm(h1 + ff, ln2g_ref[...], ln2b_ref[...]).astype(o_ref.dtype)


# ------------------------------- JAX wrapper ----------------------------------

def encoder_layer(x, add_mask, p, num_heads, q_tile=None):
    B, S, H = x.shape
    I = p["w1"].shape[1]
    assert H % num_heads == 0
    dh = H // num_heads
    cfg = _hw_config()

    # Generation-aware query tile: 256 fills the M dim of 256-wide MXUs
    # (v6e/v7x) when S is long enough; 128 matches v5e's 128-wide MXU.
    if q_tile is None:
        q_tile = 256 if (cfg.wide_mxu and S >= 256) else 128
    tq = min(q_tile, S)
    assert S % tq == 0, "sequence length must be divisible by the query tile"
    n_qt = S // tq

    kernel = functools.partial(_encoder_layer_kernel, num_heads=num_heads,
                               q_tile=tq, bf16_eup=cfg.bf16_eup)

    # Constant weight blocks: the block index never changes across the grid,
    # so a single VMEM buffer suffices (halves resident-weight VMEM on v7x).
    # Falls back to the default double-buffered pipeline if this jax build
    # rejects buffer_count == 1.
    def const(shape):
        idx = lambda b, qt: (0,) * len(shape)
        if cfg.single_buffer_weights:
            return pl.BlockSpec(shape, idx, pipeline_mode=pl.Buffered(1))
        return pl.BlockSpec(shape, idx)

    in_specs = [
        pl.BlockSpec((1, S, H), lambda b, qt: (b, 0, 0)),   # x (full seq / batch)
        pl.BlockSpec((1, 1, S), lambda b, qt: (b, 0, 0)),   # additive mask
        const((H, 3 * H)), const((1, 3 * H)),               # fused QKV weight/bias
        const((H, H)), const((1, H)),                       # wo, bo
        const((1, H)), const((1, H)),                       # ln1 gamma/beta
        const((H, I)), const((1, I)),                       # w1, b1
        const((I, H)), const((1, H)),                       # w2, b2
        const((1, H)), const((1, H)),                       # ln2 gamma/beta
    ]

    return pl.pallas_call(
        kernel,
        out_shape=jax.ShapeDtypeStruct((B, S, H), jnp.bfloat16),
        grid=(B, n_qt),
        in_specs=in_specs,
        out_specs=pl.BlockSpec((1, tq, H), lambda b, qt: (b, qt, 0)),
        # Q/K/V cached head-major for the whole sequence of one batch element.
        scratch_shapes=[pltpu.VMEM((3, num_heads, S, dh), jnp.bfloat16)],
        # In-place update of the (B,S,H) slab.  Safe because x's block index
        # is constant across qt (fetched once per batch before any writeback).
        input_output_aliases={0: 0},
        compiler_params=pltpu.CompilerParams(
            # qt must stay "arbitrary": the QKV scratch is a carried dependency
            # initialized only at qt == 0.
            dimension_semantics=("parallel", "arbitrary"),
            vmem_limit_bytes=cfg.vmem_limit_bytes,
        ),
    )(x, add_mask,
      p["wqkv"], p["bqkv"], p["wo"], p["bo"], p["ln1_g"], p["ln1_b"],
      p["w1"], p["b1"], p["w2"], p["b2"], p["ln2_g"], p["ln2_b"])


# --------------------------- parameter construction ---------------------------

def init_params(key, vocab, max_pos, H, I, num_layers):
    def nrm(k, shape, scale=0.02, dtype=jnp.bfloat16):
        return (scale * jax.random.normal(k, shape, dtype=jnp.float32)).astype(dtype)

    keys = jax.random.split(key, 4 + num_layers)
    params = {
        "word_emb": nrm(keys[0], (vocab, H), dtype=jnp.float32),
        "pos_emb": nrm(keys[1], (max_pos, H), dtype=jnp.float32),
        "type_emb": nrm(keys[2], (2, H), dtype=jnp.float32),
        "emb_ln_g": jnp.ones((1, H), jnp.float32),
        "emb_ln_b": jnp.zeros((1, H), jnp.float32),
        "layers": [],
    }
    for li in range(num_layers):
        lk = jax.random.split(keys[4 + li], 6)
        # Q|K|V weights stored fused (H, 3H) so the kernel issues one
        # lane-dense (S,H)x(H,3H) projection per batch element.
        wqkv = jnp.concatenate(
            [nrm(lk[0], (H, H)), nrm(lk[1], (H, H)), nrm(lk[2], (H, H))], axis=1)
        params["layers"].append({
            "wqkv": wqkv, "bqkv": jnp.zeros((1, 3 * H), jnp.float32),
            "wo": nrm(lk[3], (H, H)), "bo": jnp.zeros((1, H), jnp.float32),
            "ln1_g": jnp.ones((1, H), jnp.float32),
            "ln1_b": jnp.zeros((1, H), jnp.float32),
            "w1": nrm(lk[4], (H, I)), "b1": jnp.zeros((1, I), jnp.float32),
            "w2": nrm(lk[5], (I, H)), "b2": jnp.zeros((1, H), jnp.float32),
            "ln2_g": jnp.ones((1, H), jnp.float32),
            "ln2_b": jnp.zeros((1, H), jnp.float32),
        })
    return params


# ------------------------------- DualEncoder fwd ------------------------------

@functools.partial(jax.jit, static_argnums=(3,))
def dual_encoder_forward(params, input_ids, attention_mask, num_heads):
    B, S = input_ids.shape
    # Embeddings + embedding LayerNorm in plain JAX (memory-bound glue).
    x = (params["word_emb"][input_ids]
         + params["pos_emb"][jnp.arange(S)][None, :, :]
         + params["type_emb"][0][None, None, :]).astype(jnp.float32)
    mu = jnp.mean(x, axis=-1, keepdims=True)
    var = jnp.mean((x - mu) ** 2, axis=-1, keepdims=True)
    x = (x - mu) * jax.lax.rsqrt(var + 1e-12) * params["emb_ln_g"] + params["emb_ln_b"]
    x = x.astype(jnp.bfloat16)

    # BERT-style additive attention mask: 0 where attended, -1e4 where masked.
    add_mask = ((1.0 - attention_mask.astype(jnp.float32)) * -10000.0)[:, None, :]

    for layer_params in params["layers"]:
        x = encoder_layer(x, add_mask, layer_params, num_heads)

    # outputs.last_hidden_state[:, 0]  -> CLS embedding
    return x[:, 0].astype(jnp.float32)


if __name__ == "__main__":
    B, S, H, I = 2, 8, 32, 64
    NUM_HEADS, NUM_LAYERS, VOCAB, MAX_POS = 2, 2, 100, 64

    # Warm the hardware probes / config outside of jit tracing.
    _ = _hw_config()

    key = jax.random.PRNGKey(0)
    k_param, k_ids = jax.random.split(key)
    params = init_params(k_param, VOCAB, MAX_POS, H, I, NUM_LAYERS)

    input_ids = jax.random.randint(k_ids, (B, S), 0, VOCAB, dtype=jnp.int32)
    attention_mask = jnp.array(
        [[1, 1, 1, 1, 1, 1, 1, 1],
         [1, 1, 1, 1, 1, 1, 0, 0]], dtype=jnp.int32)

    cls = dual_encoder_forward(params, input_ids, attention_mask, NUM_HEADS)
    cls = jax.block_until_ready(cls)
    assert cls.shape == (B, H) and cls.dtype == jnp.float32
    assert bool(jnp.all(jnp.isfinite(cls)))
    print("KERNEL_OK")
</pallas_src>

<mosaic_0001>
module attributes {stable_mosaic.version = 11 : i64} {
  func.func @_encoder_layer_kernel(%arg0: i32, %arg1: i32, %arg2: memref<1x8x32xbf16, #tpu.memory_space<vmem>>, %arg3: memref<1x1x8xf32, #tpu.memory_space<vmem>>, %arg4: memref<32x96xbf16, #tpu.memory_space<vmem>>, %arg5: memref<1x96xf32, #tpu.memory_space<vmem>>, %arg6: memref<32x32xbf16, #tpu.memory_space<vmem>>, %arg7: memref<1x32xf32, #tpu.memory_space<vmem>>, %arg8: memref<1x32xf32, #tpu.memory_space<vmem>>, %arg9: memref<1x32xf32, #tpu.memory_space<vmem>>, %arg10: memref<32x64xbf16, #tpu.memory_space<vmem>>, %arg11: memref<1x64xf32, #tpu.memory_space<vmem>>, %arg12: memref<64x32xbf16, #tpu.memory_space<vmem>>, %arg13: memref<1x32xf32, #tpu.memory_space<vmem>>, %arg14: memref<1x32xf32, #tpu.memory_space<vmem>>, %arg15: memref<1x32xf32, #tpu.memory_space<vmem>>, %arg16: memref<1x8x32xbf16, #tpu.memory_space<vmem>>, %arg17: memref<3x2x8x16xbf16, #tpu.memory_space<vmem>>) attributes {dimension_semantics = [#tpu.dimension_semantics<parallel>, #tpu.dimension_semantics<arbitrary>], iteration_bounds = array<i64: 2, 1>, scalar_prefetch = 0 : i64, scratch_operands = 1 : i64, tpu.core_type = #tpu.core_type<tc>, window_params = [{transform_indices = @transform_0, window_bounds = array<i64: 1, 8, 32>}, {transform_indices = @transform_1, window_bounds = array<i64: 1, 1, 8>}, {pipeline_mode = #tpu.pipeline_mode<synchronous>, transform_indices = @transform_2, window_bounds = array<i64: 32, 96>}, {pipeline_mode = #tpu.pipeline_mode<synchronous>, transform_indices = @transform_3, window_bounds = array<i64: 1, 96>}, {pipeline_mode = #tpu.pipeline_mode<synchronous>, transform_indices = @transform_4, window_bounds = array<i64: 32, 32>}, {pipeline_mode = #tpu.pipeline_mode<synchronous>, transform_indices = @transform_5, window_bounds = array<i64: 1, 32>}, {pipeline_mode = #tpu.pipeline_mode<synchronous>, transform_indices = @transform_6, window_bounds = array<i64: 1, 32>}, {pipeline_mode = #tpu.pipeline_mode<synchronous>, transform_indices = @transform_7, window_bounds = array<i64: 1, 32>}, {pipeline_mode = #tpu.pipeline_mode<synchronous>, transform_indices = @transform_8, window_bounds = array<i64: 32, 64>}, {pipeline_mode = #tpu.pipeline_mode<synchronous>, transform_indices = @transform_9, window_bounds = array<i64: 1, 64>}, {pipeline_mode = #tpu.pipeline_mode<synchronous>, transform_indices = @transform_10, window_bounds = array<i64: 64, 32>}, {pipeline_mode = #tpu.pipeline_mode<synchronous>, transform_indices = @transform_11, window_bounds = array<i64: 1, 32>}, {pipeline_mode = #tpu.pipeline_mode<synchronous>, transform_indices = @transform_12, window_bounds = array<i64: 1, 32>}, {pipeline_mode = #tpu.pipeline_mode<synchronous>, transform_indices = @transform_13, window_bounds = array<i64: 1, 32>}, {transform_indices = @transform_14, window_bounds = array<i64: 1, 8, 32>}]} {
    %c0_i32 = arith.constant 0 : i32
    %0 = arith.cmpi eq, %arg1, %c0_i32 : i32
    %1 = arith.extui %0 : i1 to i32
    %c0_i32_0 = arith.constant 0 : i32
    %2 = arith.cmpi ne, %1, %c0_i32_0 : i32
    scf.if %2 {
      %c0_62 = arith.constant 0 : index
      %c0_63 = arith.constant 0 : index
      %c0_64 = arith.constant 0 : index
      %133 = vector.load %arg2[%c0_62, %c0_63, %c0_64] : memref<1x8x32xbf16, #tpu.memory_space<vmem>>, vector<1x8x32xbf16>
      %134 = vector.shape_cast %133 : vector<1x8x32xbf16> to vector<8x32xbf16>
      %c0_65 = arith.constant 0 : index
      %c0_66 = arith.constant 0 : index
      %135 = vector.load %arg4[%c0_65, %c0_66] : memref<32x96xbf16, #tpu.memory_space<vmem>>, vector<32x96xbf16>
      %cst_67 = arith.constant dense<0.000000e+00> : vector<8x96xf32>
      %136 = tpu.matmul %134, %135, %cst_67 {dimension_numbers = #tpu.dot_dimension_numbers<[1], [0], [0], [1], [0, 0, 1, 1], [], []>} : vector<8x32xbf16>, vector<32x96xbf16>, vector<8x96xf32> -> vector<8x96xf32>
      %c0_68 = arith.constant 0 : index
      %c0_69 = arith.constant 0 : index
      %137 = vector.load %arg5[%c0_68, %c0_69] : memref<1x96xf32, #tpu.memory_space<vmem>>, vector<1x96xf32>
      %138 = vector.broadcast %137 : vector<1x96xf32> to vector<8x96xf32>
      %139 = arith.addf %136, %138 : vector<8x96xf32>
      %140 = vector.extract_strided_slice %139 {offsets = [0, 0], sizes = [8, 16], strides = [1, 1]} : vector<8x96xf32> to vector<8x16xf32>
      %cst_70 = arith.constant 2.500000e-01 : f32
      %141 = vector.broadcast %cst_70 : f32 to vector<8x16xf32>
      %142 = arith.mulf %140, %141 : vector<8x16xf32>
      %143 = arith.truncf %142 : vector<8x16xf32> to vector<8x16xbf16>
      %c0_71 = arith.constant 0 : index
      %c0_72 = arith.constant 0 : index
      %c0_73 = arith.constant 0 : index
      %c0_74 = arith.constant 0 : index
      %144 = vector.load %arg17[%c0_71, %c0_72, %c0_73, %c0_74] : memref<3x2x8x16xbf16, #tpu.memory_space<vmem>>, vector<1x1x8x16xbf16>
      %145 = vector.shape_cast %144 : vector<1x1x8x16xbf16> to vector<8x16xbf16>
      %146 = vector.shape_cast %143 : vector<8x16xbf16> to vector<1x1x8x16xbf16>
      tpu.vector_store %arg17[%c0_71, %c0_72, %c0_73, %c0_74], %146 {strides = array<i32>} : memref<3x2x8x16xbf16, #tpu.memory_space<vmem>>, vector<1x1x8x16xbf16>,
      %147 = vector.extract_strided_slice %139 {offsets = [0, 32], sizes = [8, 16], strides = [1, 1]} : vector<8x96xf32> to vector<8x16xf32>
      %148 = arith.truncf %147 : vector<8x16xf32> to vector<8x16xbf16>
      %c1_75 = arith.constant 1 : index
      %c0_76 = arith.constant 0 : index
      %c0_77 = arith.constant 0 : index
      %c0_78 = arith.constant 0 : index
      %149 = vector.load %arg17[%c1_75, %c0_76, %c0_77, %c0_78] : memref<3x2x8x16xbf16, #tpu.memory_space<vmem>>, vector<1x1x8x16xbf16>
      %150 = vector.shape_cast %149 : vector<1x1x8x16xbf16> to vector<8x16xbf16>
      %151 = vector.shape_cast %148 : vector<8x16xbf16> to vector<1x1x8x16xbf16>
      tpu.vector_store %arg17[%c1_75, %c0_76, %c0_77, %c0_78], %151 {strides = array<i32>} : memref<3x2x8x16xbf16, #tpu.memory_space<vmem>>, vector<1x1x8x16xbf16>,
      %152 = vector.extract_strided_slice %139 {offsets = [0, 64], sizes = [8, 16], strides = [1, 1]} : vector<8x96xf32> to vector<8x16xf32>
      %153 = arith.truncf %152 : vector<8x16xf32> to vector<8x16xbf16>
      %c2_79 = arith.constant 2 : index
      %c0_80 = arith.constant 0 : index
      %c0_81 = arith.constant 0 : index
      %c0_82 = arith.constant 0 : index
      %154 = vector.load %arg17[%c2_79, %c0_80, %c0_81, %c0_82] : memref<3x2x8x16xbf16, #tpu.memory_space<vmem>>, vector<1x1x8x16xbf16>
      %155 = vector.shape_cast %154 : vector<1x1x8x16xbf16> to vector<8x16xbf16>
      %156 = vector.shape_cast %153 : vector<8x16xbf16> to vector<1x1x8x16xbf16>
      tpu.vector_store %arg17[%c2_79, %c0_80, %c0_81, %c0_82], %156 {strides = array<i32>} : memref<3x2x8x16xbf16, #tpu.memory_space<vmem>>, vector<1x1x8x16xbf16>,
      %157 = vector.extract_strided_slice %139 {offsets = [0, 16], sizes = [8, 16], strides = [1, 1]} : vector<8x96xf32> to vector<8x16xf32>
      %cst_83 = arith.constant 2.500000e-01 : f32
      %158 = vector.broadcast %cst_83 : f32 to vector<8x16xf32>
      %159 = arith.mulf %157, %158 : vector<8x16xf32>
      %160 = arith.truncf %159 : vector<8x16xf32> to vector<8x16xbf16>
      %c0_84 = arith.constant 0 : index
      %c1_85 = arith.constant 1 : index
      %c0_86 = arith.constant 0 : index
      %c0_87 = arith.constant 0 : index
      %161 = vector.load %arg17[%c0_84, %c1_85, %c0_86, %c0_87] : memref<3x2x8x16xbf16, #tpu.memory_space<vmem>>, vector<1x1x8x16xbf16>
      %162 = vector.shape_cast %161 : vector<1x1x8x16xbf16> to vector<8x16xbf16>
      %163 = vector.shape_cast %160 : vector<8x16xbf16> to vector<1x1x8x16xbf16>
      tpu.vector_store %arg17[%c0_84, %c1_85, %c0_86, %c0_87], %163 {strides = array<i32>} : memref<3x2x8x16xbf16, #tpu.memory_space<vmem>>, vector<1x1x8x16xbf16>,
      %164 = vector.extract_strided_slice %139 {offsets = [0, 48], sizes = [8, 16], strides = [1, 1]} : vector<8x96xf32> to vector<8x16xf32>
      %165 = arith.truncf %164 : vector<8x16xf32> to vector<8x16xbf16>
      %c1_88 = arith.constant 1 : index
      %c1_89 = arith.constant 1 : index
      %c0_90 = arith.constant 0 : index
      %c0_91 = arith.constant 0 : index
      %166 = vector.load %arg17[%c1_88, %c1_89, %c0_90, %c0_91] : memref<3x2x8x16xbf16, #tpu.memory_space<vmem>>, vector<1x1x8x16xbf16>
      %167 = vector.shape_cast %166 : vector<1x1x8x16xbf16> to vector<8x16xbf16>
      %168 = vector.shape_cast %165 : vector<8x16xbf16> to vector<1x1x8x16xbf16>
      tpu.vector_store %arg17[%c1_88, %c1_89, %c0_90, %c0_91], %168 {strides = array<i32>} : memref<3x2x8x16xbf16, #tpu.memory_space<vmem>>, vector<1x1x8x16xbf16>,
      %169 = vector.extract_strided_slice %139 {offsets = [0, 80], sizes = [8, 16], strides = [1, 1]} : vector<8x96xf32> to vector<8x16xf32>
      %170 = arith.truncf %169 : vector<8x16xf32> to vector<8x16xbf16>
      %c2_92 = arith.constant 2 : index
      %c1_93 = arith.constant 1 : index
      %c0_94 = arith.constant 0 : index
      %c0_95 = arith.constant 0 : index
      %171 = vector.load %arg17[%c2_92, %c1_93, %c0_94, %c0_95] : memref<3x2x8x16xbf16, #tpu.memory_space<vmem>>, vector<1x1x8x16xbf16>
      %172 = vector.shape_cast %171 : vector<1x1x8x16xbf16> to vector<8x16xbf16>
      %173 = vector.shape_cast %170 : vector<8x16xbf16> to vector<1x1x8x16xbf16>
      tpu.vector_store %arg17[%c2_92, %c1_93, %c0_94, %c0_95], %173 {strides = array<i32>} : memref<3x2x8x16xbf16, #tpu.memory_space<vmem>>, vector<1x1x8x16xbf16>,
    } else {
    }
    %c8_i32 = arith.constant 8 : i32
    %3 = arith.muli %arg1, %c8_i32 : i32
    %4 = tpu.assume_multiple %3, 8 : i32
    %c0 = arith.constant 0 : index
    %c0_1 = arith.constant 0 : index
    %5 = arith.index_cast %4 : i32 to index
    %c0_2 = arith.constant 0 : index
    %6 = vector.load %arg17[%c0, %c0_1, %5, %c0_2] : memref<3x2x8x16xbf16, #tpu.memory_space<vmem>>, vector<1x2x8x16xbf16>
    %7 = vector.shape_cast %6 : vector<1x2x8x16xbf16> to vector<2x8x16xbf16>
    %c1 = arith.constant 1 : index
    %c0_3 = arith.constant 0 : index
    %c0_4 = arith.constant 0 : index
    %c0_5 = arith.constant 0 : index
    %8 = vector.load %arg17[%c1, %c0_3, %c0_4, %c0_5] : memref<3x2x8x16xbf16, #tpu.memory_space<vmem>>, vector<1x2x8x16xbf16>
    %9 = vector.shape_cast %8 : vector<1x2x8x16xbf16> to vector<2x8x16xbf16>
    "tpu.trace_start"() <{level = 10 : i32, message = "hqd,hkd->hqk"}> : () -> ()
    %cst = arith.constant dense<0.000000e+00> : vector<2x8x8xf32>
    %10 = tpu.matmul %7, %9, %cst {dimension_numbers = #tpu.dot_dimension_numbers<[2], [2], [1], [1], [0, 0, 0, 1, 1, 1], [0], [0]>} : vector<2x8x16xbf16>, vector<2x8x16xbf16>, vector<2x8x8xf32> -> vector<2x8x8xf32>
    "tpu.trace_stop"() : () -> ()
    %c0_6 = arith.constant 0 : index
    %c0_7 = arith.constant 0 : index
    %c0_8 = arith.constant 0 : index
    %11 = vector.load %arg3[%c0_6, %c0_7, %c0_8] : memref<1x1x8xf32, #tpu.memory_space<vmem>>, vector<1x1x8xf32>
    %12 = vector.shape_cast %11 : vector<1x1x8xf32> to vector<1x8xf32>
    %13 = vector.shape_cast %12 : vector<1x8xf32> to vector<1x1x8xf32>
    %14 = vector.broadcast %13 : vector<1x1x8xf32> to vector<2x8x8xf32>
    %15 = arith.addf %10, %14 : vector<2x8x8xf32>
    %cst_9 = arith.constant dense<0xFF800000> : vector<2x8xf32>
    %16 = vector.multi_reduction <maximumf>, %15, %cst_9 [2] : vector<2x8x8xf32> to vector<2x8xf32>
    %17 = vector.shape_cast %16 : vector<2x8xf32> to vector<2x8x1xf32>
    %18 = vector.broadcast %17 : vector<2x8x1xf32> to vector<2x8x8xf32>
    %19 = arith.subf %15, %18 : vector<2x8x8xf32>
    %20 = math.exp %19 : vector<2x8x8xf32>
    %cst_10 = arith.constant dense<0.000000e+00> : vector<2x8xf32>
    %21 = vector.multi_reduction <add>, %20, %cst_10 [2] : vector<2x8x8xf32> to vector<2x8xf32>
    %22 = vector.shape_cast %21 : vector<2x8xf32> to vector<2x8x1xf32>
    %23 = arith.truncf %20 : vector<2x8x8xf32> to vector<2x8x8xbf16>
    %24 = tpu.reciprocal %22 {approx = true} : vector<2x8x1xf32> -> vector<2x8x1xf32>
    %25 = vector.extract_strided_slice %23 {offsets = [0, 0, 0], sizes = [1, 8, 8], strides = [1, 1, 1]} : vector<2x8x8xbf16> to vector<1x8x8xbf16>
    %26 = vector.shape_cast %25 : vector<1x8x8xbf16> to vector<8x8xbf16>
    %c2 = arith.constant 2 : index
    %c0_11 = arith.constant 0 : index
    %c0_12 = arith.constant 0 : index
    %c0_13 = arith.constant 0 : index
    %27 = vector.load %arg17[%c2, %c0_11, %c0_12, %c0_13] : memref<3x2x8x16xbf16, #tpu.memory_space<vmem>>, vector<1x1x8x16xbf16>
    %28 = vector.shape_cast %27 : vector<1x1x8x16xbf16> to vector<8x16xbf16>
    %cst_14 = arith.constant dense<0.000000e+00> : vector<8x16xf32>
    %29 = tpu.matmul %26, %28, %cst_14 {dimension_numbers = #tpu.dot_dimension_numbers<[1], [0], [0], [1], [0, 0, 1, 1], [], []>} : vector<8x8xbf16>, vector<8x16xbf16>, vector<8x16xf32> -> vector<8x16xf32>
    %30 = vector.extract_strided_slice %24 {offsets = [0, 0, 0], sizes = [1, 8, 1], strides = [1, 1, 1]} : vector<2x8x1xf32> to vector<1x8x1xf32>
    %31 = vector.shape_cast %30 : vector<1x8x1xf32> to vector<8x1xf32>
    %32 = vector.broadcast %31 : vector<8x1xf32> to vector<8x16xf32>
    %33 = arith.mulf %29, %32 : vector<8x16xf32>
    %34 = vector.extract_strided_slice %23 {offsets = [1, 0, 0], sizes = [1, 8, 8], strides = [1, 1, 1]} : vector<2x8x8xbf16> to vector<1x8x8xbf16>
    %35 = vector.shape_cast %34 : vector<1x8x8xbf16> to vector<8x8xbf16>
    %c2_15 = arith.constant 2 : index
    %c1_16 = arith.constant 1 : index
    %c0_17 = arith.constant 0 : index
    %c0_18 = arith.constant 0 : index
    %36 = vector.load %arg17[%c2_15, %c1_16, %c0_17, %c0_18] : memref<3x2x8x16xbf16, #tpu.memory_space<vmem>>, vector<1x1x8x16xbf16>
    %37 = vector.shape_cast %36 : vector<1x1x8x16xbf16> to vector<8x16xbf16>
    %cst_19 = arith.constant dense<0.000000e+00> : vector<8x16xf32>
    %38 = tpu.matmul %35, %37, %cst_19 {dimension_numbers = #tpu.dot_dimension_numbers<[1], [0], [0], [1], [0, 0, 1, 1], [], []>} : vector<8x8xbf16>, vector<8x16xbf16>, vector<8x16xf32> -> vector<8x16xf32>
    %39 = vector.extract_strided_slice %24 {offsets = [1, 0, 0], sizes = [1, 8, 1], strides = [1, 1, 1]} : vector<2x8x1xf32> to vector<1x8x1xf32>
    %40 = vector.shape_cast %39 : vector<1x8x1xf32> to vector<8x1xf32>
    %41 = vector.broadcast %40 : vector<8x1xf32> to vector<8x16xf32>
    %42 = arith.mulf %38, %41 : vector<8x16xf32>
    %43 = tpu.concatenate %33, %42 in 1 : vector<8x16xf32>, vector<8x16xf32> -> vector<8x32xf32>
    %c0_20 = arith.constant 0 : index
    %44 = arith.index_cast %4 : i32 to index
    %c0_21 = arith.constant 0 : index
    %45 = vector.load %arg2[%c0_20, %44, %c0_21] : memref<1x8x32xbf16, #tpu.memory_space<vmem>>, vector<1x8x32xbf16>
    %46 = vector.shape_cast %45 : vector<1x8x32xbf16> to vector<8x32xbf16>
    %47 = arith.truncf %43 : vector<8x32xf32> to vector<8x32xbf16>
    %c0_22 = arith.constant 0 : index
    %c0_23 = arith.constant 0 : index
    %48 = vector.load %arg6[%c0_22, %c0_23] : memref<32x32xbf16, #tpu.memory_space<vmem>>, vector<32x32xbf16>
    %cst_24 = arith.constant dense<0.000000e+00> : vector<8x32xf32>
    %49 = tpu.matmul %47, %48, %cst_24 {dimension_numbers = #tpu.dot_dimension_numbers<[1], [0], [0], [1], [0, 0, 1, 1], [], []>} : vector<8x32xbf16>, vector<32x32xbf16>, vector<8x32xf32> -> vector<8x32xf32>
    %c0_25 = arith.constant 0 : index
    %c0_26 = arith.constant 0 : index
    %50 = vector.load %arg7[%c0_25, %c0_26] : memref<1x32xf32, #tpu.memory_space<vmem>>, vector<1x32xf32>
    %51 = vector.broadcast %50 : vector<1x32xf32> to vector<8x32xf32>
    %52 = arith.addf %49, %51 : vector<8x32xf32>
    %53 = arith.extf %46 : vector<8x32xbf16> to vector<8x32xf32>
    %54 = arith.addf %53, %52 : vector<8x32xf32>
    %c0_27 = arith.constant 0 : index
    %c0_28 = arith.constant 0 : index
    %55 = vector.load %arg8[%c0_27, %c0_28] : memref<1x32xf32, #tpu.memory_space<vmem>>, vector<1x32xf32>
    %c0_29 = arith.constant 0 : index
    %c0_30 = arith.constant 0 : index
    %56 = vector.load %arg9[%c0_29, %c0_30] : memref<1x32xf32, #tpu.memory_space<vmem>>, vector<1x32xf32>
    %cst_31 = arith.constant dense<0.000000e+00> : vector<8xf32>
    %57 = vector.multi_reduction <add>, %54, %cst_31 [1] : vector<8x32xf32> to vector<8xf32>
    %58 = vector.shape_cast %57 : vector<8xf32> to vector<8x1xf32>
    %cst_32 = arith.constant 3.200000e+01 : f32
    %59 = vector.broadcast %cst_32 : f32 to vector<8x1xf32>
    %60 = arith.divf %58, %59 : vector<8x1xf32>
    %61 = vector.broadcast %60 : vector<8x1xf32> to vector<8x32xf32>
    %62 = arith.subf %54, %61 : vector<8x32xf32>
    %63 = arith.mulf %62, %62 : vector<8x32xf32>
    %cst_33 = arith.constant dense<0.000000e+00> : vector<8xf32>
    %64 = vector.multi_reduction <add>, %63, %cst_33 [1] : vector<8x32xf32> to vector<8xf32>
    %65 = vector.shape_cast %64 : vector<8xf32> to vector<8x1xf32>
    %cst_34 = arith.constant 3.200000e+01 : f32
    %66 = vector.broadcast %cst_34 : f32 to vector<8x1xf32>
    %67 = arith.divf %65, %66 : vector<8x1xf32>
    %68 = vector.broadcast %60 : vector<8x1xf32> to vector<8x32xf32>
    %69 = arith.subf %54, %68 : vector<8x32xf32>
    %cst_35 = arith.constant 9.99999996E-13 : f32
    %70 = vector.broadcast %cst_35 : f32 to vector<8x1xf32>
    %71 = arith.addf %67, %70 : vector<8x1xf32>
    %72 = math.rsqrt %71 : vector<8x1xf32>
    %73 = vector.broadcast %72 : vector<8x1xf32> to vector<8x32xf32>
    %74 = arith.mulf %69, %73 : vector<8x32xf32>
    %75 = vector.broadcast %55 : vector<1x32xf32> to vector<8x32xf32>
    %76 = arith.mulf %74, %75 : vector<8x32xf32>
    %77 = vector.broadcast %56 : vector<1x32xf32> to vector<8x32xf32>
    %78 = arith.addf %76, %77 : vector<8x32xf32>
    %79 = arith.truncf %78 : vector<8x32xf32> to vector<8x32xbf16>
    %c0_36 = arith.constant 0 : index
    %c0_37 = arith.constant 0 : index
    %80 = vector.load %arg10[%c0_36, %c0_37] : memref<32x64xbf16, #tpu.memory_space<vmem>>, vector<32x64xbf16>
    %cst_38 = arith.constant dense<0.000000e+00> : vector<8x64xf32>
    %81 = tpu.matmul %79, %80, %cst_38 {dimension_numbers = #tpu.dot_dimension_numbers<[1], [0], [0], [1], [0, 0, 1, 1], [], []>} : vector<8x32xbf16>, vector<32x64xbf16>, vector<8x64xf32> -> vector<8x64xf32>
    %c0_39 = arith.constant 0 : index
    %c0_40 = arith.constant 0 : index
    %82 = vector.load %arg11[%c0_39, %c0_40] : memref<1x64xf32, #tpu.memory_space<vmem>>, vector<1x64xf32>
    %83 = vector.broadcast %82 : vector<1x64xf32> to vector<8x64xf32>
    %84 = arith.addf %81, %83 : vector<8x64xf32>
    %85 = arith.mulf %84, %84 : vector<8x64xf32>
    %86 = arith.mulf %84, %85 : vector<8x64xf32>
    %cst_41 = arith.constant 4.471500e-02 : f32
    %87 = vector.broadcast %cst_41 : f32 to vector<8x64xf32>
    %88 = arith.mulf %87, %86 : vector<8x64xf32>
    %89 = arith.addf %84, %88 : vector<8x64xf32>
    %cst_42 = arith.constant 0.797884583 : f32
    %90 = vector.broadcast %cst_42 : f32 to vector<8x64xf32>
    %91 = arith.mulf %90, %89 : vector<8x64xf32>
    %92 = math.tanh %91 : vector<8x64xf32>
    %cst_43 = arith.constant 1.000000e+00 : f32
    %93 = vector.broadcast %cst_43 : f32 to vector<8x64xf32>
    %94 = arith.addf %93, %92 : vector<8x64xf32>
    %cst_44 = arith.constant 5.000000e-01 : f32
    %95 = vector.broadcast %cst_44 : f32 to vector<8x64xf32>
    %96 = arith.mulf %95, %94 : vector<8x64xf32>
    %97 = arith.mulf %84, %96 : vector<8x64xf32>
    %98 = arith.truncf %97 : vector<8x64xf32> to vector<8x64xbf16>
    %c0_45 = arith.constant 0 : index
    %c0_46 = arith.constant 0 : index
    %99 = vector.load %arg12[%c0_45, %c0_46] : memref<64x32xbf16, #tpu.memory_space<vmem>>, vector<64x32xbf16>
    %cst_47 = arith.constant dense<0.000000e+00> : vector<8x32xf32>
    %100 = tpu.matmul %98, %99, %cst_47 {dimension_numbers = #tpu.dot_dimension_numbers<[1], [0], [0], [1], [0, 0, 1, 1], [], []>} : vector<8x64xbf16>, vector<64x32xbf16>, vector<8x32xf32> -> vector<8x32xf32>
    %c0_48 = arith.constant 0 : index
    %c0_49 = arith.constant 0 : index
    %101 = vector.load %arg13[%c0_48, %c0_49] : memref<1x32xf32, #tpu.memory_space<vmem>>, vector<1x32xf32>
    %102 = vector.broadcast %101 : vector<1x32xf32> to vector<8x32xf32>
    %103 = arith.addf %100, %102 : vector<8x32xf32>
    %104 = arith.addf %78, %103 : vector<8x32xf32>
    %c0_50 = arith.constant 0 : index
    %c0_51 = arith.constant 0 : index
    %105 = vector.load %arg14[%c0_50, %c0_51] : memref<1x32xf32, #tpu.memory_space<vmem>>, vector<1x32xf32>
    %c0_52 = arith.constant 0 : index
    %c0_53 = arith.constant 0 : index
    %106 = vector.load %arg15[%c0_52, %c0_53] : memref<1x32xf32, #tpu.memory_space<vmem>>, vector<1x32xf32>
    %cst_54 = arith.constant dense<0.000000e+00> : vector<8xf32>
    %107 = vector.multi_reduction <add>, %104, %cst_54 [1] : vector<8x32xf32> to vector<8xf32>
    %108 = vector.shape_cast %107 : vector<8xf32> to vector<8x1xf32>
    %cst_55 = arith.constant 3.200000e+01 : f32
    %109 = vector.broadcast %cst_55 : f32 to vector<8x1xf32>
    %110 = arith.divf %108, %109 : vector<8x1xf32>
    %111 = vector.broadcast %110 : vector<8x1xf32> to vector<8x32xf32>
    %112 = arith.subf %104, %111 : vector<8x32xf32>
    %113 = arith.mulf %112, %112 : vector<8x32xf32>
    %cst_56 = arith.constant dense<0.000000e+00> : vector<8xf32>
    %114 = vector.multi_reduction <add>, %113, %cst_56 [1] : vector<8x32xf32> to vector<8xf32>
    %115 = vector.shape_cast %114 : vector<8xf32> to vector<8x1xf32>
    %cst_57 = arith.constant 3.200000e+01 : f32
    %116 = vector.broadcast %cst_57 : f32 to vector<8x1xf32>
    %117 = arith.divf %115, %116 : vector<8x1xf32>
    %118 = vector.broadcast %110 : vector<8x1xf32> to vector<8x32xf32>
    %119 = arith.subf %104, %118 : vector<8x32xf32>
    %cst_58 = arith.constant 9.99999996E-13 : f32
    %120 = vector.broadcast %cst_58 : f32 to vector<8x1xf32>
    %121 = arith.addf %117, %120 : vector<8x1xf32>
    %122 = math.rsqrt %121 : vector<8x1xf32>
    %123 = vector.broadcast %122 : vector<8x1xf32> to vector<8x32xf32>
    %124 = arith.mulf %119, %123 : vector<8x32xf32>
    %125 = vector.broadcast %105 : vector<1x32xf32> to vector<8x32xf32>
    %126 = arith.mulf %124, %125 : vector<8x32xf32>
    %127 = vector.broadcast %106 : vector<1x32xf32> to vector<8x32xf32>
    %128 = arith.addf %126, %127 : vector<8x32xf32>
    %129 = arith.truncf %128 : vector<8x32xf32> to vector<8x32xbf16>
    %c0_59 = arith.constant 0 : index
    %c0_60 = arith.constant 0 : index
    %c0_61 = arith.constant 0 : index
    %130 = vector.load %arg16[%c0_59, %c0_60, %c0_61] : memref<1x8x32xbf16, #tpu.memory_space<vmem>>, vector<1x8x32xbf16>
    %131 = vector.shape_cast %130 : vector<1x8x32xbf16> to vector<8x32xbf16>
    %132 = vector.shape_cast %129 : vector<8x32xbf16> to vector<1x8x32xbf16>
    tpu.vector_store %arg16[%c0_59, %c0_60, %c0_61], %132 {strides = array<i32>} : memref<1x8x32xbf16, #tpu.memory_space<vmem>>, vector<1x8x32xbf16>,
    return
  }
  func.func @transform_0(%arg0: i32, %arg1: i32) -> (i32, i32, i32) {
    %c0_i32 = arith.constant 0 : i32
    %c0_i32_0 = arith.constant 0 : i32
    %c0_i32_1 = arith.constant 0 : i32
    return %arg0, %c0_i32, %c0_i32_0 : i32, i32, i32
  }
  func.func @transform_1(%arg0: i32, %arg1: i32) -> (i32, i32, i32) {
    %c0_i32 = arith.constant 0 : i32
    %c0_i32_0 = arith.constant 0 : i32
    %c0_i32_1 = arith.constant 0 : i32
    return %arg0, %c0_i32, %c0_i32_0 : i32, i32, i32
  }
  func.func @transform_2(%arg0: i32, %arg1: i32) -> (i32, i32) {
    %c0_i32 = arith.constant 0 : i32
    %c0_i32_0 = arith.constant 0 : i32
    %c0_i32_1 = arith.constant 0 : i32
    return %c0_i32, %c0_i32_0 : i32, i32
  }
  func.func @transform_3(%arg0: i32, %arg1: i32) -> (i32, i32) {
    %c0_i32 = arith.constant 0 : i32
    %c0_i32_0 = arith.constant 0 : i32
    %c0_i32_1 = arith.constant 0 : i32
    return %c0_i32, %c0_i32_0 : i32, i32
  }
  func.func @transform_4(%arg0: i32, %arg1: i32) -> (i32, i32) {
    %c0_i32 = arith.constant 0 : i32
    %c0_i32_0 = arith.constant 0 : i32
    %c0_i32_1 = arith.constant 0 : i32
    return %c0_i32, %c0_i32_0 : i32, i32
  }
  func.func @transform_5(%arg0: i32, %arg1: i32) -> (i32, i32) {
    %c0_i32 = arith.constant 0 : i32
    %c0_i32_0 = arith.constant 0 : i32
    %c0_i32_1 = arith.constant 0 : i32
    return %c0_i32, %c0_i32_0 : i32, i32
  }
  func.func @transform_6(%arg0: i32, %arg1: i32) -> (i32, i32) {
    %c0_i32 = arith.constant 0 : i32
    %c0_i32_0 = arith.constant 0 : i32
    %c0_i32_1 = arith.constant 0 : i32
    return %c0_i32, %c0_i32_0 : i32, i32
  }
  func.func @transform_7(%arg0: i32, %arg1: i32) -> (i32, i32) {
    %c0_i32 = arith.constant 0 : i32
    %c0_i32_0 = arith.constant 0 : i32
    %c0_i32_1 = arith.constant 0 : i32
    return %c0_i32, %c0_i32_0 : i32, i32
  }
  func.func @transform_8(%arg0: i32, %arg1: i32) -> (i32, i32) {
    %c0_i32 = arith.constant 0 : i32
    %c0_i32_0 = arith.constant 0 : i32
    %c0_i32_1 = arith.constant 0 : i32
    return %c0_i32, %c0_i32_0 : i32, i32
  }
  func.func @transform_9(%arg0: i32, %arg1: i32) -> (i32, i32) {
    %c0_i32 = arith.constant 0 : i32
    %c0_i32_0 = arith.constant 0 : i32
    %c0_i32_1 = arith.constant 0 : i32
    return %c0_i32, %c0_i32_0 : i32, i32
  }
  func.func @transform_10(%arg0: i32, %arg1: i32) -> (i32, i32) {
    %c0_i32 = arith.constant 0 : i32
    %c0_i32_0 = arith.constant 0 : i32
    %c0_i32_1 = arith.constant 0 : i32
    return %c0_i32, %c0_i32_0 : i32, i32
  }
  func.func @transform_11(%arg0: i32, %arg1: i32) -> (i32, i32) {
    %c0_i32 = arith.constant 0 : i32
    %c0_i32_0 = arith.constant 0 : i32
    %c0_i32_1 = arith.constant 0 : i32
    return %c0_i32, %c0_i32_0 : i32, i32
  }
  func.func @transform_12(%arg0: i32, %arg1: i32) -> (i32, i32) {
    %c0_i32 = arith.constant 0 : i32
    %c0_i32_0 = arith.constant 0 : i32
    %c0_i32_1 = arith.constant 0 : i32
    return %c0_i32, %c0_i32_0 : i32, i32
  }
  func.func @transform_13(%arg0: i32, %arg1: i32) -> (i32, i32) {
    %c0_i32 = arith.constant 0 : i32
    %c0_i32_0 = arith.constant 0 : i32
    %c0_i32_1 = arith.constant 0 : i32
    return %c0_i32, %c0_i32_0 : i32, i32
  }
  func.func @transform_14(%arg0: i32, %arg1: i32) -> (i32, i32, i32) {
    %c0_i32 = arith.constant 0 : i32
    %c0_i32_0 = arith.constant 0 : i32
    return %arg0, %arg1, %c0_i32 : i32, i32, i32
  }
}

</mosaic_0001>

<llo_original>
// kernel: dual_encoder_forward.2
$region0: #{dual_encoder_forward.2}
  #allocation0 [shape = 'u32[]', space=smem, size = 0x4, offset = 0x4, fixed_abs, tag = 'smem constant byte address 0x4 - core index']
  #allocation1 [shape = 'u32[144,128]{1,0:T(1,128)}', space=vmem, size = 0x12000, scoped, tag = 'internal scratch']
  #allocation2 [shape = 'bf16[3,2,8,16]{3,2,1,0:T(8,128)(2,1)}', space=vmem, size = 0x3000, scoped, tag = 'scratch operand']
  %s0 = inlined_call_operand.vmem [shape: bf16[2,8,32], index: 0, kind: input, shape index: {}, may-alias: {0,14}]
  %s1 = inlined_call_operand.vmem [shape: f32[2,1,8], index: 1, kind: input, shape index: {}]
  %s2 = inlined_call_operand.vmem [shape: bf16[32,96], index: 2, kind: input, shape index: {}]
  %s3 = inlined_call_operand.vmem [shape: f32[1,96], index: 3, kind: input, shape index: {}]
  %s4 = inlined_call_operand.vmem [shape: bf16[32,32], index: 4, kind: input, shape index: {}]
  %s5 = inlined_call_operand.vmem [shape: f32[1,32], index: 5, kind: input, shape index: {}]
  %s6 = inlined_call_operand.vmem [shape: f32[1,32], index: 6, kind: input, shape index: {}]
  %s7 = inlined_call_operand.vmem [shape: f32[1,32], index: 7, kind: input, shape index: {}]
  %s8 = inlined_call_operand.vmem [shape: bf16[32,64], index: 8, kind: input, shape index: {}]
  %s9 = inlined_call_operand.vmem [shape: f32[1,64], index: 9, kind: input, shape index: {}]
  %s10 = inlined_call_operand.vmem [shape: bf16[64,32], index: 10, kind: input, shape index: {}]
  %s11 = inlined_call_operand.vmem [shape: f32[1,32], index: 11, kind: input, shape index: {}]
  %s12 = inlined_call_operand.vmem [shape: f32[1,32], index: 12, kind: input, shape index: {}]
  %s13 = inlined_call_operand.vmem [shape: f32[1,32], index: 13, kind: input, shape index: {}]
  %s14 = inlined_call_operand.vmem [shape: bf16[2,8,32], index: 14, kind: output, shape index: {}, may-alias: {0,14}]
  %s15 = sld [smem:[#allocation0]]
  $region93: #{dual_encoder_forward.2} parent=0
    _
  %s17 = ssub.s32 1, %s15
  %s18 = scalar_select 0, %s17, %s15
  loop: start=0, step=1, limit=4
  $region2: #{dual_encoder_forward.2} parent=0 // loop_pre_header
    _
  $region3: #{dual_encoder_forward.2} parent=0 // loop_header
    %s20 = sphi 0, %s24
    %p21 = scmp.ge.s32.totalorder %s20, 4
    %s27 = sphi 0, %s39
    %s28 = sphi 0, %s35
    %s29 = sphi 0, %s27
    %s30 = sphi 0, %s28
    %s31 = sphi 0, %s29
    %s32 = sphi 0, %s30
    %s42 = sphi 0, %s44
    %s45 = sphi 0, %s42
    %s46 = sphi 0, %s45
    %s62 = sphi 0, %s46
    %s68 = sphi 0, %s70
    %s71 = sphi 0, %s68
    %s72 = sphi 0, %s71
    %s88 = sphi 0, %s72
    %s92 = sphi 0, %s92
    %s94 = sphi 0, %s92
    %s95 = sphi 0, %s94
    %s109 = sphi 0, %s95
    %s113 = sphi 0, %s113
    %s115 = sphi 0, %s113
    %s116 = sphi 0, %s115
    %s130 = sphi 0, %s116
    %s134 = sphi 0, %s134
    %s136 = sphi 0, %s134
    %s137 = sphi 0, %s136
    %s151 = sphi 0, %s137
    %s155 = sphi 0, %s155
    %s157 = sphi 0, %s155
    %s158 = sphi 0, %s157
    %s172 = sphi 0, %s158
    %s176 = sphi 0, %s176
    %s178 = sphi 0, %s176
    %s179 = sphi 0, %s178
    %s193 = sphi 0, %s179
    %s197 = sphi 0, %s197
    %s199 = sphi 0, %s197
    %s200 = sphi 0, %s199
    %s214 = sphi 0, %s200
    %s218 = sphi 0, %s218
    %s220 = sphi 0, %s218
    %s221 = sphi 0, %s220
    %s235 = sphi 0, %s221
    %s239 = sphi 0, %s239
    %s241 = sphi 0, %s239
    %s242 = sphi 0, %s241
    %s256 = sphi 0, %s242
    %s260 = sphi 0, %s260
    %s262 = sphi 0, %s260
    %s263 = sphi 0, %s262
    %s277 = sphi 0, %s263
    %s281 = sphi 0, %s281
    %s283 = sphi 0, %s281
    %s284 = sphi 0, %s283
    %s298 = sphi 0, %s284
    %s302 = sphi 0, %s302
    %s304 = sphi 0, %s302
    %s305 = sphi 0, %s304
    %s319 = sphi 0, %s305
    %s323 = sphi 0, %s323
    %s325 = sphi 0, %s323
    %s326 = sphi 0, %s325
    %s340 = sphi 0, %s326
    %s348 = sphi 0, %s350
    %s351 = sphi 0, %s348
    %s352 = sphi 0, %s351
    %s368 = sphi 0, %s352
  $region4: #{dual_encoder_forward.2} parent=0 // loop_header_branch
    %23 = sbr.rel (%p21) target = $region8
  $region5: #{dual_encoder_forward.2} parent=0 // loop_body
    %s25 = ssub.s32 %s20, 1
    %s26 = ssub.s32 %s20, 2
    %s33 = sadd.s32 1, %s28
    %p34 = scmp.ge.s32.totalorder %s33, 1
    %s35 = scalar_select %p34, 0, %s33
    %s36 = sadd.s32 1, %s27
    %s37 = scalar_select %p34, %s36, %s27
    %p38 = scmp.ge.s32.totalorder %s37, 2
    %s39 = scalar_select %p38, 0, %s37
    %s40 = ssub.s32 %s27, %s39
    %p41 = scmp.eq.s32.totalorder %s40, 0
    %s43 = sadd.s32 %s42, 1
    %s44 = scalar_select %p41, %s42, %s43
    %p47 = pneg %p41
    %p48 = scmp.eq.s32.totalorder %s20, 1
    %p49 = por %p47, %p48
    %p50 = scmp.ne.s32.totalorder %s42, %s45
    %p51 = scmp.eq.s32.totalorder %s20, 0
    %p52 = por %p50, %p51
    %p53 = scmp.ne.s32.totalorder %s42, %s45
    %p54 = scmp.eq.s32.totalorder %s25, 1
    %p55 = por %p53, %p54
    %p56 = scmp.ne.s32.totalorder %s45, %s46
    %p57 = scmp.eq.s32.totalorder %s25, 0
    %p58 = por %p56, %p57
    %p59 = scmp.ne.s32.totalorder %s45, %s46
    %p60 = scmp.eq.s32.totalorder %s26, 1
    %p61 = por %p59, %p60
    %p63 = scmp.ne.s32.totalorder %s46, %s62
    %p64 = scmp.eq.s32.totalorder %s26, 0
    %p65 = por %p63, %p64
    %s66 = ssub.s32 %s27, %s39
    %p67 = scmp.eq.s32.totalorder %s66, 0
    %s69 = sadd.s32 %s68, 1
    %s70 = scalar_select %p67, %s68, %s69
    %p73 = pneg %p67
    %p74 = scmp.eq.s32.totalorder %s20, 1
    %p75 = por %p73, %p74
    %p76 = scmp.ne.s32.totalorder %s68, %s71
    %p77 = scmp.eq.s32.totalorder %s20, 0
    %p78 = por %p76, %p77
    %p79 = scmp.ne.s32.totalorder %s68, %s71
    %p80 = scmp.eq.s32.totalorder %s25, 1
    %p81 = por %p79, %p80
    %p82 = scmp.ne.s32.totalorder %s71, %s72
    %p83 = scmp.eq.s32.totalorder %s25, 0
    %p84 = por %p82, %p83
    %p85 = scmp.ne.s32.totalorder %s71, %s72
    %p86 = scmp.eq.s32.totalorder %s26, 1
    %p87 = por %p85, %p86
    %p89 = scmp.ne.s32.totalorder %s72, %s88
    %p90 = scmp.eq.s32.totalorder %s26, 0
    %p91 = por %p89, %p90
    %s93 = sadd.s32 %s92, 1
    %p96 = scmp.eq.s32.totalorder %s20, 1
    %p97 = scmp.ne.s32.totalorder %s92, %s94
    %p98 = scmp.eq.s32.totalorder %s20, 0
    %p99 = por %p97, %p98
    %p100 = scmp.ne.s32.totalorder %s92, %s94
    %p101 = scmp.eq.s32.totalorder %s25, 1
    %p102 = por %p100, %p101
    %p103 = scmp.ne.s32.totalorder %s94, %s95
    %p104 = scmp.eq.s32.totalorder %s25, 0
    %p105 = por %p103, %p104
    %p106 = scmp.ne.s32.totalorder %s94, %s95
    %p107 = scmp.eq.s32.totalorder %s26, 1
    %p108 = por %p106, %p107
    %p110 = scmp.ne.s32.totalorder %s95, %s109
    %p111 = scmp.eq.s32.totalorder %s26, 0
    %p112 = por %p110, %p111
    %s114 = sadd.s32 %s113, 1
    %p117 = scmp.eq.s32.totalorder %s20, 1
    %p118 = scmp.ne.s32.totalorder %s113, %s115
    %p119 = scmp.eq.s32.totalorder %s20, 0
    %p120 = por %p118, %p119
    %p121 = scmp.ne.s32.totalorder %s113, %s115
    %p122 = scmp.eq.s32.totalorder %s25, 1
    %p123 = por %p121, %p122
    %p124 = scmp.ne.s32.totalorder %s115, %s116
    %p125 = scmp.eq.s32.totalorder %s25, 0
    %p126 = por %p124, %p125
    %p127 = scmp.ne.s32.totalorder %s115, %s116
    %p128 = scmp.eq.s32.totalorder %s26, 1
    %p129 = por %p127, %p128
    %p131 = scmp.ne.s32.totalorder %s116, %s130
    %p132 = scmp.eq.s32.totalorder %s26, 0
    %p133 = por %p131, %p132
    %s135 = sadd.s32 %s134, 1
    %p138 = scmp.eq.s32.totalorder %s20, 1
    %p139 = scmp.ne.s32.totalorder %s134, %s136
    %p140 = scmp.eq.s32.totalorder %s20, 0
    %p141 = por %p139, %p140
    %p142 = scmp.ne.s32.totalorder %s134, %s136
    %p143 = scmp.eq.s32.totalorder %s25, 1
    %p144 = por %p142, %p143
    %p145 = scmp.ne.s32.totalorder %s136, %s137
    %p146 = scmp.eq.s32.totalorder %s25, 0
    %p147 = por %p145, %p146
    %p148 = scmp.ne.s32.totalorder %s136, %s137
    %p149 = scmp.eq.s32.totalorder %s26, 1
    %p150 = por %p148, %p149
    %p152 = scmp.ne.s32.totalorder %s137, %s151
    %p153 = scmp.eq.s32.totalorder %s26, 0
    %p154 = por %p152, %p153
    %s156 = sadd.s32 %s155, 1
    %p159 = scmp.eq.s32.totalorder %s20, 1
    %p160 = scmp.ne.s32.totalorder %s155, %s157
    %p161 = scmp.eq.s32.totalorder %s20, 0
    %p162 = por %p160, %p161
    %p163 = scmp.ne.s32.totalorder %s155, %s157
    %p164 = scmp.eq.s32.totalorder %s25, 1
    %p165 = por %p163, %p164
    %p166 = scmp.ne.s32.totalorder %s157, %s158
    %p167 = scmp.eq.s32.totalorder %s25, 0
    %p168 = por %p166, %p167
    %p169 = scmp.ne.s32.totalorder %s157, %s158
    %p170 = scmp.eq.s32.totalorder %s26, 1
    %p171 = por %p169, %p170
    %p173 = scmp.ne.s32.totalorder %s158, %s172
    %p174 = scmp.eq.s32.totalorder %s26, 0
    %p175 = por %p173, %p174
    %s177 = sadd.s32 %s176, 1
    %p180 = scmp.eq.s32.totalorder %s20, 1
    %p181 = scmp.ne.s32.totalorder %s176, %s178
    %p182 = scmp.eq.s32.totalorder %s20, 0
    %p183 = por %p181, %p182
    %p184 = scmp.ne.s32.totalorder %s176, %s178
    %p185 = scmp.eq.s32.totalorder %s25, 1
    %p186 = por %p184, %p185
    %p187 = scmp.ne.s32.totalorder %s178, %s179
    %p188 = scmp.eq.s32.totalorder %s25, 0
    %p189 = por %p187, %p188
    %p190 = scmp.ne.s32.totalorder %s178, %s179
    %p191 = scmp.eq.s32.totalorder %s26, 1
    %p192 = por %p190, %p191
    %p194 = scmp.ne.s32.totalorder %s179, %s193
    %p195 = scmp.eq.s32.totalorder %s26, 0
    %p196 = por %p194, %p195
    %s198 = sadd.s32 %s197, 1
    %p201 = scmp.eq.s32.totalorder %s20, 1
    %p202 = scmp.ne.s32.totalorder %s197, %s199
    %p203 = scmp.eq.s32.totalorder %s20, 0
    %p204 = por %p202, %p203
    %p205 = scmp.ne.s32.totalorder %s197, %s199
    %p206 = scmp.eq.s32.totalorder %s25, 1
    %p207 = por %p205, %p206
    %p208 = scmp.ne.s32.totalorder %s199, %s200
    %p209 = scmp.eq.s32.totalorder %s25, 0
    %p210 = por %p208, %p209
    %p211 = scmp.ne.s32.totalorder %s199, %s200
    %p212 = scmp.eq.s32.totalorder %s26, 1
    %p213 = por %p211, %p212
    %p215 = scmp.ne.s32.totalorder %s200, %s214
    %p216 = scmp.eq.s32.totalorder %s26, 0
    %p217 = por %p215, %p216
    %s219 = sadd.s32 %s218, 1
    %p222 = scmp.eq.s32.totalorder %s20, 1
    %p223 = scmp.ne.s32.totalorder %s218, %s220
    %p224 = scmp.eq.s32.totalorder %s20, 0
    %p225 = por %p223, %p224
    %p226 = scmp.ne.s32.totalorder %s218, %s220
    %p227 = scmp.eq.s32.totalorder %s25, 1
    %p228 = por %p226, %p227
    %p229 = scmp.ne.s32.totalorder %s220, %s221
    %p230 = scmp.eq.s32.totalorder %s25, 0
    %p231 = por %p229, %p230
    %p232 = scmp.ne.s32.totalorder %s220, %s221
    %p233 = scmp.eq.s32.totalorder %s26, 1
    %p234 = por %p232, %p233
    %p236 = scmp.ne.s32.totalorder %s221, %s235
    %p237 = scmp.eq.s32.totalorder %s26, 0
    %p238 = por %p236, %p237
    %s240 = sadd.s32 %s239, 1
    %p243 = scmp.eq.s32.totalorder %s20, 1
    %p244 = scmp.ne.s32.totalorder %s239, %s241
    %p245 = scmp.eq.s32.totalorder %s20, 0
    %p246 = por %p244, %p245
    %p247 = scmp.ne.s32.totalorder %s239, %s241
    %p248 = scmp.eq.s32.totalorder %s25, 1
    %p249 = por %p247, %p248
    %p250 = scmp.ne.s32.totalorder %s241, %s242
    %p251 = scmp.eq.s32.totalorder %s25, 0
    %p252 = por %p250, %p251
    %p253 = scmp.ne.s32.totalorder %s241, %s242
    %p254 = scmp.eq.s32.totalorder %s26, 1
    %p255 = por %p253, %p254
    %p257 = scmp.ne.s32.totalorder %s242, %s256
    %p258 = scmp.eq.s32.totalorder %s26, 0
    %p259 = por %p257, %p258
    %s261 = sadd.s32 %s260, 1
    %p264 = scmp.eq.s32.totalorder %s20, 1
    %p265 = scmp.ne.s32.totalorder %s260, %s262
    %p266 = scmp.eq.s32.totalorder %s20, 0
    %p267 = por %p265, %p266
    %p268 = scmp.ne.s32.totalorder %s260, %s262
    %p269 = scmp.eq.s32.totalorder %s25, 1
    %p270 = por %p268, %p269
    %p271 = scmp.ne.s32.totalorder %s262, %s263
    %p272 = scmp.eq.s32.totalorder %s25, 0
    %p273 = por %p271, %p272
    %p274 = scmp.ne.s32.totalorder %s262, %s263
    %p275 = scmp.eq.s32.totalorder %s26, 1
    %p276 = por %p274, %p275
    %p278 = scmp.ne.s32.totalorder %s263, %s277
    %p279 = scmp.eq.s32.totalorder %s26, 0
    %p280 = por %p278, %p279
    %s282 = sadd.s32 %s281, 1
    %p285 = scmp.eq.s32.totalorder %s20, 1
    %p286 = scmp.ne.s32.totalorder %s281, %s283
    %p287 = scmp.eq.s32.totalorder %s20, 0
    %p288 = por %p286, %p287
    %p289 = scmp.ne.s32.totalorder %s281, %s283
    %p290 = scmp.eq.s32.totalorder %s25, 1
    %p291 = por %p289, %p290
    %p292 = scmp.ne.s32.totalorder %s283, %s284
    %p293 = scmp.eq.s32.totalorder %s25, 0
    %p294 = por %p292, %p293
    %p295 = scmp.ne.s32.totalorder %s283, %s284
    %p296 = scmp.eq.s32.totalorder %s26, 1
    %p297 = por %p295, %p296
    %p299 = scmp.ne.s32.totalorder %s284, %s298
    %p300 = scmp.eq.s32.totalorder %s26, 0
    %p301 = por %p299, %p300
    %s303 = sadd.s32 %s302, 1
    %p306 = scmp.eq.s32.totalorder %s20, 1
    %p307 = scmp.ne.s32.totalorder %s302, %s304
    %p308 = scmp.eq.s32.totalorder %s20, 0
    %p309 = por %p307, %p308
    %p310 = scmp.ne.s32.totalorder %s302, %s304
    %p311 = scmp.eq.s32.totalorder %s25, 1
    %p312 = por %p310, %p311
    %p313 = scmp.ne.s32.totalorder %s304, %s305
    %p314 = scmp.eq.s32.totalorder %s25, 0
    %p315 = por %p313, %p314
    %p316 = scmp.ne.s32.totalorder %s304, %s305
    %p317 = scmp.eq.s32.totalorder %s26, 1
    %p318 = por %p316, %p317
    %p320 = scmp.ne.s32.totalorder %s305, %s319
    %p321 = scmp.eq.s32.totalorder %s26, 0
    %p322 = por %p320, %p321
    %s324 = sadd.s32 %s323, 1
    %p327 = scmp.eq.s32.totalorder %s20, 1
    %p328 = scmp.ne.s32.totalorder %s323, %s325
    %p329 = scmp.eq.s32.totalorder %s20, 0
    %p330 = por %p328, %p329
    %p331 = scmp.ne.s32.totalorder %s323, %s325
    %p332 = scmp.eq.s32.totalorder %s25, 1
    %p333 = por %p331, %p332
    %p334 = scmp.ne.s32.totalorder %s325, %s326
    %p335 = scmp.eq.s32.totalorder %s25, 0
    %p336 = por %p334, %p335
    %p337 = scmp.ne.s32.totalorder %s325, %s326
    %p338 = scmp.eq.s32.totalorder %s26, 1
    %p339 = por %p337, %p338
    %p341 = scmp.ne.s32.totalorder %s326, %s340
    %p342 = scmp.eq.s32.totalorder %s26, 0
    %p343 = por %p341, %p342
    %s344 = ssub.s32 %s27, %s39
    %s345 = ssub.s32 %s28, %s35
    %s346 = sor.u32 %s344, %s345
    %p347 = scmp.eq.s32.totalorder %s346, 0
    %s349 = sadd.s32 %s348, 1
    %s350 = scalar_select %p347, %s348, %s349
    %p353 = pneg %p347
    %p354 = scmp.eq.s32.totalorder %s20, 1
    %p355 = por %p353, %p354
    %p356 = scmp.ne.s32.totalorder %s348, %s351
    %p357 = scmp.eq.s32.totalorder %s20, 0
    %p358 = por %p356, %p357
    %p359 = scmp.ne.s32.totalorder %s348, %s351
    %p360 = scmp.eq.s32.totalorder %s25, 1
    %p361 = por %p359, %p360
    %p362 = scmp.ne.s32.totalorder %s351, %s352
    %p363 = scmp.eq.s32.totalorder %s25, 0
    %p364 = por %p362, %p363
    %p365 = scmp.ne.s32.totalorder %s351, %s352
    %p366 = scmp.eq.s32.totalorder %s26, 1
    %p367 = por %p365, %p366
    %p369 = scmp.ne.s32.totalorder %s352, %s368
    %p370 = scmp.eq.s32.totalorder %s26, 0
    %p371 = por %p369, %p370
    %p372 = scmp.le.s32.totalorder 1, %s20
    %p373 = scmp.lt.s32.totalorder %s20, 3
    %p374 = pnand %p372, %p373
    %p375 = pneg %p374
    // Predicated region
    $region9: #{dual_encoder_forward.2} parent=5 // pred_check
      _
    $region10: #{dual_encoder_forward.2} parent=5 // pred_check_branch
      %377 = sbr.rel (%p374) target = $region12
    $region11: #{dual_encoder_forward.2} parent=5 // pred_region
      %s378 = ssub.s32 %s20, 1
      // Predicated region
      $region13: #{dual_encoder_forward.2} parent=11 // pred_check
        %p379 = pneg %p105
      $region14: #{dual_encoder_forward.2} parent=11 // pred_check_branch
        %381 = sbr.rel (%p379) target = $region16
      $region15: #{dual_encoder_forward.2} parent=11 // pred_region
        _
      $region16: #{dual_encoder_forward.2} parent=11 // pred_fallthru
        _
      // Predicated region
      $region17: #{dual_encoder_forward.2} parent=11 // pred_check
        %p382 = pneg %p126
      $region18: #{dual_encoder_forward.2} parent=11 // pred_check_branch
        %384 = sbr.rel (%p382) target = $region20
      $region19: #{dual_encoder_forward.2} parent=11 // pred_region
        _
      $region20: #{dual_encoder_forward.2} parent=11 // pred_fallthru
        _
      // Predicated region
      $region21: #{dual_encoder_forward.2} parent=11 // pred_check
        %p385 = pneg %p147
      $region22: #{dual_encoder_forward.2} parent=11 // pred_check_branch
        %387 = sbr.rel (%p385) target = $region24
      $region23: #{dual_encoder_forward.2} parent=11 // pred_region
        _
      $region24: #{dual_encoder_forward.2} parent=11 // pred_fallthru
        _
      // Predicated region
      $region25: #{dual_encoder_forward.2} parent=11 // pred_check
        %p388 = pneg %p168
      $region26: #{dual_encoder_forward.2} parent=11 // pred_check_branch
        %390 = sbr.rel (%p388) target = $region28
      $region27: #{dual_encoder_forward.2} parent=11 // pred_region
        _
      $region28: #{dual_encoder_forward.2} parent=11 // pred_fallthru
        _
      // Predicated region
      $region29: #{dual_encoder_forward.2} parent=11 // pred_check
        %p391 = pneg %p189
      $region30: #{dual_encoder_forward.2} parent=11 // pred_check_branch
        %393 = sbr.rel (%p391) target = $region32
      $region31: #{dual_encoder_forward.2} parent=11 // pred_region
        _
      $region32: #{dual_encoder_forward.2} parent=11 // pred_fallthru
        _
      // Predicated region
      $region33: #{dual_encoder_forward.2} parent=11 // pred_check
        %p394 = pneg %p210
      $region34: #{dual_encoder_forward.2} parent=11 // pred_check_branch
        %396 = sbr.rel (%p394) target = $region36
      $region35: #{dual_encoder_forward.2} parent=11 // pred_region
        _
      $region36: #{dual_encoder_forward.2} parent=11 // pred_fallthru
        _
      // Predicated region
      $region37: #{dual_encoder_forward.2} parent=11 // pred_check
        %p397 = pneg %p231
      $region38: #{dual_encoder_forward.2} parent=11 // pred_check_branch
        %399 = sbr.rel (%p397) target = $region40
      $region39: #{dual_encoder_forward.2} parent=11 // pred_region
        _
      $region40: #{dual_encoder_forward.2} parent=11 // pred_fallthru
        _
      // Predicated region
      $region41: #{dual_encoder_forward.2} parent=11 // pred_check
        %p400 = pneg %p252
      $region42: #{dual_encoder_forward.2} parent=11 // pred_check_branch
        %402 = sbr.rel (%p400) target = $region44
      $region43: #{dual_encoder_forward.2} parent=11 // pred_region
        _
      $region44: #{dual_encoder_forward.2} parent=11 // pred_fallthru
        _
      // Predicated region
      $region45: #{dual_encoder_forward.2} parent=11 // pred_check
        %p403 = pneg %p273
      $region46: #{dual_encoder_forward.2} parent=11 // pred_check_branch
        %405 = sbr.rel (%p403) target = $region48
      $region47: #{dual_encoder_forward.2} parent=11 // pred_region
        _
      $region48: #{dual_encoder_forward.2} parent=11 // pred_fallthru
        _
      // Predicated region
      $region49: #{dual_encoder_forward.2} parent=11 // pred_check
        %p406 = pneg %p294
      $region50: #{dual_encoder_forward.2} parent=11 // pred_check_branch
        %408 = sbr.rel (%p406) target = $region52
      $region51: #{dual_encoder_forward.2} parent=11 // pred_region
        _
      $region52: #{dual_encoder_forward.2} parent=11 // pred_fallthru
        _
      // Predicated region
      $region53: #{dual_encoder_forward.2} parent=11 // pred_check
        %p409 = pneg %p315
      $region54: #{dual_encoder_forward.2} parent=11 // pred_check_branch
        %411 = sbr.rel (%p409) target = $region56
      $region55: #{dual_encoder_forward.2} parent=11 // pred_region
        _
      $region56: #{dual_encoder_forward.2} parent=11 // pred_fallthru
        _
      // Predicated region
      $region57: #{dual_encoder_forward.2} parent=11 // pred_check
        %p412 = pneg %p336
      $region58: #{dual_encoder_forward.2} parent=11 // pred_check_branch
        %414 = sbr.rel (%p412) target = $region60
      $region59: #{dual_encoder_forward.2} parent=11 // pred_region
        _
      $region60: #{dual_encoder_forward.2} parent=11 // pred_fallthru
        _
    $region12: #{dual_encoder_forward.2} parent=5 // pred_fallthru
      _
    %p415 = scmp.lt.s32.totalorder %s20, 2
    // Predicated region
    $region61: #{dual_encoder_forward.2} parent=5 // pred_check
      %p416 = pneg %p415
    $region62: #{dual_encoder_forward.2} parent=5 // pred_check_branch
      %418 = sbr.rel (%p416) target = $region64
    $region63: #{dual_encoder_forward.2} parent=5 // pred_region
      // Predicated region
      $region65: #{dual_encoder_forward.2} parent=63 // pred_check
        %p419 = pneg %p52
      $region66: #{dual_encoder_forward.2} parent=63 // pred_check_branch
        %421 = sbr.rel (%p419) target = $region68
      $region67: #{dual_encoder_forward.2} parent=63 // pred_region
        %p422 = scmp.lt.s32.totalorder %s27, 1
        %s423 = scalar_select %p422, %s27, 1
        %s424 = smul.addr %s423, 4
        %s425 = scalar_lea.vmem %s0, %s424
      $region68: #{dual_encoder_forward.2} parent=63 // pred_fallthru
        _
      // Predicated region
      $region69: #{dual_encoder_forward.2} parent=63 // pred_check
        %p426 = pneg %p78
      $region70: #{dual_encoder_forward.2} parent=63 // pred_check_branch
        %428 = sbr.rel (%p426) target = $region72
      $region71: #{dual_encoder_forward.2} parent=63 // pred_region
        %p429 = scmp.lt.s32.totalorder %s27, 1
        %s430 = scalar_select %p429, %s27, 1
        %s431 = scalar_lea.vmem %s1, %s430
      $region72: #{dual_encoder_forward.2} parent=63 // pred_fallthru
        _
    $region64: #{dual_encoder_forward.2} parent=5 // pred_fallthru
      _
    %p432 = scmp.le.s32.totalorder 1, %s20
    %p433 = scmp.lt.s32.totalorder %s20, 3
    %p434 = pnand %p432, %p433
    %p435 = pneg %p434
    // Predicated region
    $region73: #{dual_encoder_forward.2} parent=5 // pred_check
      _
    $region74: #{dual_encoder_forward.2} parent=5 // pred_check_branch
      %437 = sbr.rel (%p434) target = $region76
    $region75: #{dual_encoder_forward.2} parent=5 // pred_region
      %s438 = ssub.s32 %s20, 1
      %p439 = scmp.lt.s32.totalorder %s29, 1
      %s440 = scalar_select %p439, %s29, 1
      %s441 = smul.addr %s440, 4
      %s442 = scalar_lea.vmem %s0, %s441
      %p443 = pneg %p58
      %p444 = pneg %p55
      %p445 = scmp.lt.s32.totalorder %s29, 1
      %s446 = scalar_select %p445, %s29, 1
      %s447 = scalar_lea.vmem %s1, %s446
      %p448 = pneg %p84
      %p449 = pneg %p81
      %p450 = pneg %p105
      %p451 = pneg %p102
      %p452 = pneg %p126
      %p453 = pneg %p123
      %p454 = pneg %p147
      %p455 = pneg %p144
      %p456 = pneg %p168
      %p457 = pneg %p165
      %p458 = pneg %p189
      %p459 = pneg %p186
      %p460 = pneg %p210
      %p461 = pneg %p207
      %p462 = pneg %p231
      %p463 = pneg %p228
      %p464 = pneg %p252
      %p465 = pneg %p249
      %p466 = pneg %p273
      %p467 = pneg %p270
      %p468 = pneg %p294
      %p469 = pneg %p291
      %p470 = pneg %p315
      %p471 = pneg %p312
      %p472 = pneg %p336
      %p473 = pneg %p333
      %p474 = pneg %p364
      %p475 = pneg %p361
      %p476 = scmp.lt.s32.totalorder %s29, 1
      %s477 = scalar_select %p476, %s29, 1
      %p478 = scmp.lt.s32.totalorder %s30, 0
      %s479 = scalar_select %p478, %s30, 0
      %s480 = sadd.s32 %s479, %s477
      %s481 = smul.addr %s480, 4
      %s482 = scalar_lea.vmem %s14, %s481
      %p483 = scmp.lt.s32.totalorder %s29, 1
      %s484 = scalar_select %p483, %s29, 1
      %s485 = smul.addr %s484, 4
      %s486 = scalar_lea.vmem %s0, %s485
      %p487 = scmp.lt.s32.totalorder %s29, 1
      %s488 = scalar_select %p487, %s29, 1
      %s489 = scalar_lea.vmem %s1, %s488
      %p490 = scmp.lt.s32.totalorder %s29, 1
      %s491 = scalar_select %p490, %s29, 1
      %p492 = scmp.lt.s32.totalorder %s30, 0
      %s493 = scalar_select %p492, %s30, 0
      %s494 = sadd.s32 %s493, %s491
      %s495 = smul.addr %s494, 4
      %s496 = scalar_lea.vmem %s14, %s495
      %p498 = scmp.eq.s32.totalorder %s30, 0
      // Predicated region
      $region77: #{dual_encoder_forward.2} parent=75 // pred_check
        %p499 = pneg %p498
      $region78: #{dual_encoder_forward.2} parent=75 // pred_check_branch
        %501 = sbr.rel (%p499) target = $region80
      $region79: #{dual_encoder_forward.2} parent=75 // pred_region
        %v502 = vld [vmem:[%s486] sm:$0xf]
        %v503 = vld [vmem:[%s2] sm:$0xf]
        %v504 = vld [vmem:[%s2 + $0x4] sm:$0xf]
        %v505 = vld [vmem:[%s2 + $0x8] sm:$0xf]
        %v506 = vld [vmem:[%s2 + $0xc] sm:$0xf]
        %v507 = vld [vmem:[%s3] sm:$0x1]
        %v509 = vlaneseq
        %v510 = vshrl.u32 %v509, 7
        %v511 = vsub.s32 0, %v510
        %v512 = vrot.slane %v507, %v511
        %v518 = vunpack.c.l.b16 %v503
        %v519 = vunpack.c.l.b16 %v504
        %v520 = vunpack.c.l.b16 %v505
        %v521 = vunpack.c.l.b16 %v506
        %v522 = vpack.c.b16 %v519, %v518
        %v523 = vpack.c.b16 %v521, %v520
        %vm526 = vcmask 261120
        %v528 = vsel %vm526, %v502, 0
        %530 = vmatprep.subr.bf16.mxu0 0
        %531 = vmatpush1.bf16.msra.mxu0 %v522
        %532 = vmatprep.subr.bf16.mxu0 0
        %533 = vmatpush1.bf16.msra.mxu0 %v523
        %534 = vmatprep.subr.bf16.mxu0 0
        %535 = vmatpush1.bf16.msra.mxu0 0
        %536 = vmatprep.subr.bf16.mxu0 0
        %537 = vmatpush1.bf16.msra.mxu0 0
        %538 = vmatprep.subr.bf16.mxu0 0
        %539 = vmatpush1.bf16.msra.mxu0 0
        %540 = vmatprep.subr.bf16.mxu0 0
        %541 = vmatpush1.bf16.msra.mxu0 0
        %542 = vmatprep.subr.bf16.mxu0 0
        %543 = vmatpush1.bf16.msra.mxu0 0
        %544 = vmatprep.subr.bf16.mxu0 0
        %545 = vmatpush1.bf16.msra.mxu0 0
        %546 = vmatprep.subr.bf16.mxu0 0
        %547 = vmatpush1.bf16.msra.mxu0 0
        %548 = vmatprep.subr.bf16.mxu0 0
        %549 = vmatpush1.bf16.msra.mxu0 0
        %550 = vmatprep.subr.bf16.mxu0 0
        %551 = vmatpush1.bf16.msra.mxu0 0
        %552 = vmatprep.subr.bf16.mxu0 0
        %553 = vmatpush1.bf16.msra.mxu0 0
        %554 = vmatprep.subr.bf16.mxu0 0
        %555 = vmatpush1.bf16.msra.mxu0 0
        %556 = vmatprep.subr.bf16.mxu0 0
        %557 = vmatpush1.bf16.msra.mxu0 0
        %558 = vmatprep.subr.bf16.mxu0 0
        %559 = vmatpush1.bf16.msra.mxu0 0
        %560 = vmatprep.subr.bf16.mxu0 0
        %561 = vmatpush1.bf16.msra.mxu0 0
        %562 = vmatprep.mubr.bf16.mxu0 0
        %563 = vmatmul.mubr.bf16.gmra.mrb[0].mxu0 %v528
        %v564 = vpop.f32.mrb[0].mxu0
        %v565 = vadd.f32 %v512, %v564
        %v566 = vpop.f32.mrb[0].mxu0
        %v567 = vpop.f32.mrb[0].mxu0
        %v568 = vpop.f32.mrb[0].mxu0
        %569 = vdwg.mxu0
        %v570 = vmul.f32 %v565, 0.25
        %v571 = vpack.c.bf16 %v570, %v570
        %vm572 = vcmask 125952
        %573 = vst.msk [vmem:[#allocation2] sm:$0xf] %vm572, %v571
        %v574 = vpack.c.bf16 %v565, %v565
        %v576 = vunpack.c.l.b16 %v574
        %v577 = vpack.c.b16 %v576, %v576
        %578 = vrot.lane.b32.xlu0 %v577, 96
        %v579 = vpop.permute.xlu0 %578
        %s581 = scalar_lea.vmem [#allocation2], 8
        %582 = vst.msk [vmem:[%s581] sm:$0xf] %vm572, %v579
        %583 = vrot.lane.b32.xlu0 %v577, 64
        %v584 = vpop.permute.xlu0 %583
        %s586 = scalar_lea.vmem [#allocation2], 16
        %587 = vst.msk [vmem:[%s586] sm:$0xf] %vm572, %v584
        %v589 = vunpack.c.l.b16 %v571
        %v590 = vpack.c.b16 %v589, %v589
        %591 = vrot.lane.b32.xlu0 %v590, 112
        %v592 = vpop.permute.xlu0 %591
        %s594 = scalar_lea.vmem [#allocation2], 4
        %595 = vst.msk [vmem:[%s594] sm:$0xf] %vm572, %v592
        %596 = vrot.lane.b32.xlu0 %v577, 80
        %v597 = vpop.permute.xlu0 %596
        %s599 = scalar_lea.vmem [#allocation2], 12
        %600 = vst.msk [vmem:[%s599] sm:$0xf] %vm572, %v597
        %601 = vrot.lane.b32.xlu0 %v577, 48
        %v602 = vpop.permute.xlu0 %601
        %s604 = scalar_lea.vmem [#allocation2], 20
        %605 = vst.msk [vmem:[%s604] sm:$0xf] %vm572, %v602
      $region80: #{dual_encoder_forward.2} parent=75 // pred_fallthru
        _
      %s606 = smul.u32 %s30, 8
      %s607 = sshra.s32 %s606, 3
      %s608 = sand.u32 %s606, 7
      %s609 = smul.addr %s607, 4
      %s610 = scalar_lea.vmem [#allocation2], %s609
      %v611 = vld [vmem:[%s610] sm:$0xf]
      %v612 = vld [vmem:[%s610 + $0x4] sm:$0xf]
      %s613 = scalar_lea.vmem [#allocation2], 8
      %v614 = vld [vmem:[%s613] sm:$0xf]
      %v615 = vld [vmem:[%s613 + $0x4] sm:$0xf]
      %v616 = vld [vmem:[%s489] sm:$0x1]
      %v618 = vlaneseq
      %v619 = vshrl.u32 %v618, 7
      %v620 = vsub.s32 0, %v619
      %v621 = vrot.slane %v616, %v620
      %vm623 = vcmask 130048
      %v625 = vsel %vm623, %v611, 0
      %v628 = vsel %vm623, %v614, 0
      %630 = vmatprep.subr.bf16.mxu0 0
      %631 = vmatpush1.bf16.xpose.msra.mxu0 %v628
      %632 = vmatprep.subr.bf16.mxu0 0
      %633 = vmatpush1.bf16.xpose.msra.mxu0 0
      %634 = vmatprep.subr.bf16.mxu0 0
      %635 = vmatpush1.bf16.xpose.msra.mxu0 0
      %636 = vmatprep.subr.bf16.mxu0 0
      %637 = vmatpush1.bf16.xpose.msra.mxu0 0
      %638 = vmatprep.subr.bf16.mxu0 0
      %639 = vmatpush1.bf16.xpose.msra.mxu0 0
      %640 = vmatprep.subr.bf16.mxu0 0
      %641 = vmatpush1.bf16.xpose.msra.mxu0 0
      %642 = vmatprep.subr.bf16.mxu0 0
      %643 = vmatpush1.bf16.xpose.msra.mxu0 0
      %644 = vmatprep.subr.bf16.mxu0 0
      %645 = vmatpush1.bf16.xpose.msra.mxu0 0
      %646 = vmatprep.subr.bf16.mxu0 0
      %647 = vmatpush1.bf16.xpose.msra.mxu0 0
      %648 = vmatprep.subr.bf16.mxu0 0
      %649 = vmatpush1.bf16.xpose.msra.mxu0 0
      %650 = vmatprep.subr.bf16.mxu0 0
      %651 = vmatpush1.bf16.xpose.msra.mxu0 0
      %652 = vmatprep.subr.bf16.mxu0 0
      %653 = vmatpush1.bf16.xpose.msra.mxu0 0
      %654 = vmatprep.subr.bf16.mxu0 0
      %655 = vmatpush1.bf16.xpose.msra.mxu0 0
      %656 = vmatprep.subr.bf16.mxu0 0
      %657 = vmatpush1.bf16.xpose.msra.mxu0 0
      %658 = vmatprep.subr.bf16.mxu0 0
      %659 = vmatpush1.bf16.xpose.msra.mxu0 0
      %660 = vmatprep.subr.bf16.mxu0 0
      %661 = vmatpush1.bf16.xpose.msra.mxu0 0
      %662 = vmatprep.mubr.bf16.mxu0 0
      %663 = vmatmul.mubr.bf16.gmra.mrb[0].mxu0 %v625
      %v664 = vpop.f32.mrb[0].mxu0
      %v665 = vadd.f32 %v621, %v664
      %v666 = vpop.f32.mrb[0].mxu0
      %v667 = vpop.f32.mrb[0].mxu0
      %v668 = vpop.f32.mrb[0].mxu0
      %669 = vdwg.mxu0
      %v671 = vsel %vm623, %v612, 0
      %v674 = vsel %vm623, %v615, 0
      %676 = vmatprep.subr.bf16.mxu0 0
      %677 = vmatpush1.bf16.xpose.msra.mxu0 %v674
      %678 = vmatprep.subr.bf16.mxu0 0
      %679 = vmatpush1.bf16.xpose.msra.mxu0 0
      %680 = vmatprep.subr.bf16.mxu0 0
      %681 = vmatpush1.bf16.xpose.msra.mxu0 0
      %682 = vmatprep.subr.bf16.mxu0 0
      %683 = vmatpush1.bf16.xpose.msra.mxu0 0
      %684 = vmatprep.subr.bf16.mxu0 0
      %685 = vmatpush1.bf16.xpose.msra.mxu0 0
      %686 = vmatprep.subr.bf16.mxu0 0
      %687 = vmatpush1.bf16.xpose.msra.mxu0 0
      %688 = vmatprep.subr.bf16.mxu0 0
      %689 = vmatpush1.bf16.xpose.msra.mxu0 0
      %690 = vmatprep.subr.bf16.mxu0 0
      %691 = vmatpush1.bf16.xpose.msra.mxu0 0
      %692 = vmatprep.subr.bf16.mxu0 0
      %693 = vmatpush1.bf16.xpose.msra.mxu0 0
      %694 = vmatprep.subr.bf16.mxu0 0
      %695 = vmatpush1.bf16.xpose.msra.mxu0 0
      %696 = vmatprep.subr.bf16.mxu0 0
      %697 = vmatpush1.bf16.xpose.msra.mxu0 0
      %698 = vmatprep.subr.bf16.mxu0 0
      %699 = vmatpush1.bf16.xpose.msra.mxu0 0
      %700 = vmatprep.subr.bf16.mxu0 0
      %701 = vmatpush1.bf16.xpose.msra.mxu0 0
      %702 = vmatprep.subr.bf16.mxu0 0
      %703 = vmatpush1.bf16.xpose.msra.mxu0 0
      %704 = vmatprep.subr.bf16.mxu0 0
      %705 = vmatpush1.bf16.xpose.msra.mxu0 0
      %706 = vmatprep.subr.bf16.mxu0 0
      %707 = vmatpush1.bf16.xpose.msra.mxu0 0
      %708 = vmatprep.mubr.bf16.mxu0 0
      %709 = vmatmul.mubr.bf16.gmra.mrb[0].mxu0 %v671
      %v710 = vpop.f32.mrb[0].mxu0
      %v711 = vadd.f32 %v621, %v710
      %v712 = vpop.f32.mrb[0].mxu0
      %v713 = vpop.f32.mrb[0].mxu0
      %v714 = vpop.f32.mrb[0].mxu0
      %715 = vdwg.mxu0
      %vm716 = vcmask 64512
      %v717 = vsel %vm716, %v665, -inf
      %718 = vmax.xlane.f32.xlu0 %v717
      %v719 = vpop.xlane.xlu0 %718
      %v720 = vsel %vm716, %v711, -inf
      %721 = vmax.xlane.f32.xlu0 %v720
      %v722 = vpop.xlane.xlu0 %721
      %v723 = vsub.f32 %v665, %v719
      %v724 = vsub.f32 %v711, %v722
      %v725 = vmul.f32 %v723, 1.442695
      %v726 = vpow.pop %v725
      %v727 = vmul.f32 %v724, 1.442695
      %v728 = vpow.pop %v727
      %v729 = vsel %vm716, %v726, 0.0
      %730 = vadd.xlane.f32.xlu0 %v729
      %v731 = vpop.xlane.xlu0 %730
      %v732 = vsel %vm716, %v728, 0.0
      %733 = vadd.xlane.f32.xlu0 %v732
      %v734 = vpop.xlane.xlu0 %733
      %v735 = vpack.c.bf16 %v726, %v726
      %v736 = vpack.c.bf16 %v728, %v728
      %v737 = vrcp.pop %v731
      %v738 = vrcp.pop %v734
      %s739 = scalar_lea.vmem [#allocation2], 16
      %v740 = vld [vmem:[%s739] sm:$0xf]
      %v742 = vsel %vm716, %v735, 0
      %vm744 = vcmask 1043456
      %v746 = vsel %vm744, %v740, 0
      %748 = vmatprep.subr.bf16.mxu0 0
      %749 = vmatpush1.bf16.msra.mxu0 %v746
      %750 = vmatprep.subr.bf16.mxu0 0
      %751 = vmatpush1.bf16.msra.mxu0 0
      %752 = vmatprep.subr.bf16.mxu0 0
      %753 = vmatpush1.bf16.msra.mxu0 0
      %754 = vmatprep.subr.bf16.mxu0 0
      %755 = vmatpush1.bf16.msra.mxu0 0
      %756 = vmatprep.subr.bf16.mxu0 0
      %757 = vmatpush1.bf16.msra.mxu0 0
      %758 = vmatprep.subr.bf16.mxu0 0
      %759 = vmatpush1.bf16.msra.mxu0 0
      %760 = vmatprep.subr.bf16.mxu0 0
      %761 = vmatpush1.bf16.msra.mxu0 0
      %762 = vmatprep.subr.bf16.mxu0 0
      %763 = vmatpush1.bf16.msra.mxu0 0
      %764 = vmatprep.subr.bf16.mxu0 0
      %765 = vmatpush1.bf16.msra.mxu0 0
      %766 = vmatprep.subr.bf16.mxu0 0
      %767 = vmatpush1.bf16.msra.mxu0 0
      %768 = vmatprep.subr.bf16.mxu0 0
      %769 = vmatpush1.bf16.msra.mxu0 0
      %770 = vmatprep.subr.bf16.mxu0 0
      %771 = vmatpush1.bf16.msra.mxu0 0
      %772 = vmatprep.subr.bf16.mxu0 0
      %773 = vmatpush1.bf16.msra.mxu0 0
      %774 = vmatprep.subr.bf16.mxu0 0
      %775 = vmatpush1.bf16.msra.mxu0 0
      %776 = vmatprep.subr.bf16.mxu0 0
      %777 = vmatpush1.bf16.msra.mxu0 0
      %778 = vmatprep.subr.bf16.mxu0 0
      %779 = vmatpush1.bf16.msra.mxu0 0
      %780 = vmatprep.mubr.bf16.mxu0 0
      %781 = vmatmul.mubr.bf16.gmra.mrb[0].mxu0 %v742
      %v782 = vpop.f32.mrb[0].mxu0
      %v783 = vadd.f32 0.0, %v782
      %v784 = vpop.f32.mrb[0].mxu0
      %v785 = vpop.f32.mrb[0].mxu0
      %v786 = vpop.f32.mrb[0].mxu0
      %787 = vdwg.mxu0
      %v788 = vmul.f32 %v783, %v737
      %s789 = scalar_lea.vmem [#allocation2], 20
      %v790 = vld [vmem:[%s789] sm:$0xf]
      %v792 = vsel %vm716, %v736, 0
      %v795 = vsel %vm744, %v790, 0
      %797 = vmatprep.subr.bf16.mxu0 0
      %798 = vmatpush1.bf16.msra.mxu0 %v795
      %799 = vmatprep.subr.bf16.mxu0 0
      %800 = vmatpush1.bf16.msra.mxu0 0
      %801 = vmatprep.subr.bf16.mxu0 0
      %802 = vmatpush1.bf16.msra.mxu0 0
      %803 = vmatprep.subr.bf16.mxu0 0
      %804 = vmatpush1.bf16.msra.mxu0 0
      %805 = vmatprep.subr.bf16.mxu0 0
      %806 = vmatpush1.bf16.msra.mxu0 0
      %807 = vmatprep.subr.bf16.mxu0 0
      %808 = vmatpush1.bf16.msra.mxu0 0
      %809 = vmatprep.subr.bf16.mxu0 0
      %810 = vmatpush1.bf16.msra.mxu0 0
      %811 = vmatprep.subr.bf16.mxu0 0
      %812 = vmatpush1.bf16.msra.mxu0 0
      %813 = vmatprep.subr.bf16.mxu0 0
      %814 = vmatpush1.bf16.msra.mxu0 0
      %815 = vmatprep.subr.bf16.mxu0 0
      %816 = vmatpush1.bf16.msra.mxu0 0
      %817 = vmatprep.subr.bf16.mxu0 0
      %818 = vmatpush1.bf16.msra.mxu0 0
      %819 = vmatprep.subr.bf16.mxu0 0
      %820 = vmatpush1.bf16.msra.mxu0 0
      %821 = vmatprep.subr.bf16.mxu0 0
      %822 = vmatpush1.bf16.msra.mxu0 0
      %823 = vmatprep.subr.bf16.mxu0 0
      %824 = vmatpush1.bf16.msra.mxu0 0
      %825 = vmatprep.subr.bf16.mxu0 0
      %826 = vmatpush1.bf16.msra.mxu0 0
      %827 = vmatprep.subr.bf16.mxu0 0
      %828 = vmatpush1.bf16.msra.mxu0 0
      %829 = vmatprep.mubr.bf16.mxu0 0
      %830 = vmatmul.mubr.bf16.gmra.mrb[0].mxu0 %v792
      %v831 = vpop.f32.mrb[0].mxu0
      %v832 = vadd.f32 0.0, %v831
      %v833 = vpop.f32.mrb[0].mxu0
      %v834 = vpop.f32.mrb[0].mxu0
      %v835 = vpop.f32.mrb[0].mxu0
      %836 = vdwg.mxu0
      %v837 = vmul.f32 %v832, %v738
      %839 = vrot.lane.b32.xlu0 %v837, 16
      %v840 = vpop.permute.xlu0 %839
      %v842 = vsel %vm623, %v788, %v840
      %s843 = smul.addr %s607, 4
      %s844 = scalar_lea.vmem %s486, %s843
      %v845 = vld [vmem:[%s844] sm:$0xf]
      %v846 = vpack.c.bf16 %v842, %v842
      %v847 = vld [vmem:[%s4] sm:$0xf]
      %v848 = vld [vmem:[%s4 + $0x4] sm:$0xf]
      %v849 = vld [vmem:[%s4 + $0x8] sm:$0xf]
      %v850 = vld [vmem:[%s4 + $0xc] sm:$0xf]
      %v851 = vld [vmem:[%s5] sm:$0x1]
      %v853 = vlaneseq
      %v854 = vshrl.u32 %v853, 7
      %v855 = vsub.s32 0, %v854
      %v856 = vrot.slane %v851, %v855
      %v862 = vunpack.c.l.b16 %v847
      %v863 = vunpack.c.l.b16 %v848
      %v864 = vunpack.c.l.b16 %v849
      %v865 = vunpack.c.l.b16 %v850
      %v866 = vpack.c.b16 %v863, %v862
      %v867 = vpack.c.b16 %v865, %v864
      %vm870 = vcmask 261120
      %v872 = vsel %vm870, %v846, 0
      %874 = vmatprep.subr.bf16.mxu0 0
      %875 = vmatpush1.bf16.msra.mxu0 %v866
      %876 = vmatprep.subr.bf16.mxu0 0
      %877 = vmatpush1.bf16.msra.mxu0 %v867
      %878 = vmatprep.subr.bf16.mxu0 0
      %879 = vmatpush1.bf16.msra.mxu0 0
      %880 = vmatprep.subr.bf16.mxu0 0
      %881 = vmatpush1.bf16.msra.mxu0 0
      %882 = vmatprep.subr.bf16.mxu0 0
      %883 = vmatpush1.bf16.msra.mxu0 0
      %884 = vmatprep.subr.bf16.mxu0 0
      %885 = vmatpush1.bf16.msra.mxu0 0
      %886 = vmatprep.subr.bf16.mxu0 0
      %887 = vmatpush1.bf16.msra.mxu0 0
      %888 = vmatprep.subr.bf16.mxu0 0
      %889 = vmatpush1.bf16.msra.mxu0 0
      %890 = vmatprep.subr.bf16.mxu0 0
      %891 = vmatpush1.bf16.msra.mxu0 0
      %892 = vmatprep.subr.bf16.mxu0 0
      %893 = vmatpush1.bf16.msra.mxu0 0
      %894 = vmatprep.subr.bf16.mxu0 0
      %895 = vmatpush1.bf16.msra.mxu0 0
      %896 = vmatprep.subr.bf16.mxu0 0
      %897 = vmatpush1.bf16.msra.mxu0 0
      %898 = vmatprep.subr.bf16.mxu0 0
      %899 = vmatpush1.bf16.msra.mxu0 0
      %900 = vmatprep.subr.bf16.mxu0 0
      %901 = vmatpush1.bf16.msra.mxu0 0
      %902 = vmatprep.subr.bf16.mxu0 0
      %903 = vmatpush1.bf16.msra.mxu0 0
      %904 = vmatprep.subr.bf16.mxu0 0
      %905 = vmatpush1.bf16.msra.mxu0 0
      %906 = vmatprep.mubr.bf16.mxu0 0
      %907 = vmatmul.mubr.bf16.gmra.mrb[0].mxu0 %v872
      %v908 = vpop.f32.mrb[0].mxu0
      %v909 = vadd.f32 %v856, %v908
      %v910 = vpop.f32.mrb[0].mxu0
      %v911 = vpop.f32.mrb[0].mxu0
      %v912 = vpop.f32.mrb[0].mxu0
      %913 = vdwg.mxu0
      %v914 = vunpack.c.l.bf16 %v845
      %v915 = vadd.f32 %v914, %v909
      %v916 = vld [vmem:[%s6] sm:$0x1]
      %v917 = vld [vmem:[%s7] sm:$0x1]
      %v918 = vsel %vm870, %v915, 0.0
      %919 = vadd.xlane.f32.xlu0 %v918
      %v920 = vpop.xlane.xlu0 %919
      %v921 = vrcp.pop 32.0
      %v922 = vmul.f32 %v920, %v921
      %v923 = vsub.f32 %v915, %v922
      %v924 = vmul.f32 %v923, %v923
      %v925 = vsel %vm870, %v924, 0.0
      %926 = vadd.xlane.f32.xlu0 %v925
      %v927 = vpop.xlane.xlu0 %926
      %v928 = vmul.f32 %v927, %v921
      %v929 = vadd.f32 %v928, 1e-12
      %v930 = vrsqrt.pop %v929
      %v931 = vmul.f32 %v923, %v930
      %v933 = vlaneseq
      %v934 = vshrl.u32 %v933, 7
      %v935 = vsub.s32 0, %v934
      %v936 = vrot.slane %v916, %v935
      %v938 = vmul.f32 %v931, %v936
      %v940 = vlaneseq
      %v941 = vshrl.u32 %v940, 7
      %v942 = vsub.s32 0, %v941
      %v943 = vrot.slane %v917, %v942
      %v945 = vadd.f32 %v938, %v943
      %v946 = vpack.c.bf16 %v945, %v945
      %v947 = vld [vmem:[%s8] sm:$0xf]
      %v948 = vld [vmem:[%s8 + $0x4] sm:$0xf]
      %v949 = vld [vmem:[%s8 + $0x8] sm:$0xf]
      %v950 = vld [vmem:[%s8 + $0xc] sm:$0xf]
      %v951 = vld [vmem:[%s9] sm:$0x1]
      %v953 = vlaneseq
      %v954 = vshrl.u32 %v953, 7
      %v955 = vsub.s32 0, %v954
      %v956 = vrot.slane %v951, %v955
      %v962 = vunpack.c.l.b16 %v947
      %v963 = vunpack.c.l.b16 %v948
      %v964 = vunpack.c.l.b16 %v949
      %v965 = vunpack.c.l.b16 %v950
      %v966 = vpack.c.b16 %v963, %v962
      %v967 = vpack.c.b16 %v965, %v964
      %v971 = vsel %vm870, %v946, 0
      %973 = vmatprep.subr.bf16.mxu0 0
      %974 = vmatpush1.bf16.msra.mxu0 %v966
      %975 = vmatprep.subr.bf16.mxu0 0
      %976 = vmatpush1.bf16.msra.mxu0 %v967
      %977 = vmatprep.subr.bf16.mxu0 0
      %978 = vmatpush1.bf16.msra.mxu0 0
      %979 = vmatprep.subr.bf16.mxu0 0
      %980 = vmatpush1.bf16.msra.mxu0 0
      %981 = vmatprep.subr.bf16.mxu0 0
      %982 = vmatpush1.bf16.msra.mxu0 0
      %983 = vmatprep.subr.bf16.mxu0 0
      %984 = vmatpush1.bf16.msra.mxu0 0
      %985 = vmatprep.subr.bf16.mxu0 0
      %986 = vmatpush1.bf16.msra.mxu0 0
      %987 = vmatprep.subr.bf16.mxu0 0
      %988 = vmatpush1.bf16.msra.mxu0 0
      %989 = vmatprep.subr.bf16.mxu0 0
      %990 = vmatpush1.bf16.msra.mxu0 0
      %991 = vmatprep.subr.bf16.mxu0 0
      %992 = vmatpush1.bf16.msra.mxu0 0
      %993 = vmatprep.subr.bf16.mxu0 0
      %994 = vmatpush1.bf16.msra.mxu0 0
      %995 = vmatprep.subr.bf16.mxu0 0
      %996 = vmatpush1.bf16.msra.mxu0 0
      %997 = vmatprep.subr.bf16.mxu0 0
      %998 = vmatpush1.bf16.msra.mxu0 0
      %999 = vmatprep.subr.bf16.mxu0 0
      %1000 = vmatpush1.bf16.msra.mxu0 0
      %1001 = vmatprep.subr.bf16.mxu0 0
      %1002 = vmatpush1.bf16.msra.mxu0 0
      %1003 = vmatprep.subr.bf16.mxu0 0
      %1004 = vmatpush1.bf16.msra.mxu0 0
      %1005 = vmatprep.mubr.bf16.mxu0 0
      %1006 = vmatmul.mubr.bf16.gmra.mrb[0].mxu0 %v971
      %v1007 = vpop.f32.mrb[0].mxu0
      %v1008 = vadd.f32 %v956, %v1007
      %v1009 = vpop.f32.mrb[0].mxu0
      %v1010 = vpop.f32.mrb[0].mxu0
      %v1011 = vpop.f32.mrb[0].mxu0
      %1012 = vdwg.mxu0
      %v1013 = vmul.f32 %v1008, %v1008
      %v1014 = vmul.f32 %v1008, %v1013
      %v1015 = vmul.f32 %v1014, 0.044715
      %v1016 = vadd.f32 %v1008, %v1015
      %v1017 = vmul.f32 %v1016, 0.7978846
      %v1018 = vtanh.pop %v1017
      %v1019 = vadd.f32 %v1018, 1.0
      %v1020 = vmul.f32 %v1019, 0.5
      %v1021 = vmul.f32 %v1008, %v1020
      %v1022 = vpack.c.bf16 %v1021, %v1021
      %v1023 = vld [vmem:[%s10] sm:$0xf]
      %v1024 = vld [vmem:[%s10 + $0x4] sm:$0xf]
      %v1025 = vld [vmem:[%s10 + $0x8] sm:$0xf]
      %v1026 = vld [vmem:[%s10 + $0xc] sm:$0xf]
      %v1027 = vld [vmem:[%s10 + $0x10] sm:$0xf]
      %v1028 = vld [vmem:[%s10 + $0x14] sm:$0xf]
      %v1029 = vld [vmem:[%s10 + $0x18] sm:$0xf]
      %v1030 = vld [vmem:[%s10 + $0x1c] sm:$0xf]
      %v1031 = vld [vmem:[%s11] sm:$0x1]
      %v1033 = vlaneseq
      %v1034 = vshrl.u32 %v1033, 7
      %v1035 = vsub.s32 0, %v1034
      %v1036 = vrot.slane %v1031, %v1035
      %v1046 = vunpack.c.l.b16 %v1023
      %v1047 = vunpack.c.l.b16 %v1024
      %v1048 = vunpack.c.l.b16 %v1025
      %v1049 = vunpack.c.l.b16 %v1026
      %v1050 = vunpack.c.l.b16 %v1027
      %v1051 = vunpack.c.l.b16 %v1028
      %v1052 = vunpack.c.l.b16 %v1029
      %v1053 = vunpack.c.l.b16 %v1030
      %v1054 = vpack.c.b16 %v1047, %v1046
      %v1055 = vpack.c.b16 %v1049, %v1048
      %v1056 = vpack.c.b16 %v1051, %v1050
      %v1057 = vpack.c.b16 %v1053, %v1052
      %vm1062 = vcmask 523264
      %v1064 = vsel %vm1062, %v1022, 0
      %1066 = vmatprep.subr.bf16.mxu0 0
      %1067 = vmatpush1.bf16.msra.mxu0 %v1054
      %1068 = vmatprep.subr.bf16.mxu0 0
      %1069 = vmatpush1.bf16.msra.mxu0 %v1055
      %1070 = vmatprep.subr.bf16.mxu0 0
      %1071 = vmatpush1.bf16.msra.mxu0 %v1056
      %1072 = vmatprep.subr.bf16.mxu0 0
      %1073 = vmatpush1.bf16.msra.mxu0 %v1057
      %1074 = vmatprep.subr.bf16.mxu0 0
      %1075 = vmatpush1.bf16.msra.mxu0 0
      %1076 = vmatprep.subr.bf16.mxu0 0
      %1077 = vmatpush1.bf16.msra.mxu0 0
      %1078 = vmatprep.subr.bf16.mxu0 0
      %1079 = vmatpush1.bf16.msra.mxu0 0
      %1080 = vmatprep.subr.bf16.mxu0 0
      %1081 = vmatpush1.bf16.msra.mxu0 0
      %1082 = vmatprep.subr.bf16.mxu0 0
      %1083 = vmatpush1.bf16.msra.mxu0 0
      %1084 = vmatprep.subr.bf16.mxu0 0
      %1085 = vmatpush1.bf16.msra.mxu0 0
      %1086 = vmatprep.subr.bf16.mxu0 0
      %1087 = vmatpush1.bf16.msra.mxu0 0
      %1088 = vmatprep.subr.bf16.mxu0 0
      %1089 = vmatpush1.bf16.msra.mxu0 0
      %1090 = vmatprep.subr.bf16.mxu0 0
      %1091 = vmatpush1.bf16.msra.mxu0 0
      %1092 = vmatprep.subr.bf16.mxu0 0
      %1093 = vmatpush1.bf16.msra.mxu0 0
      %1094 = vmatprep.subr.bf16.mxu0 0
      %1095 = vmatpush1.bf16.msra.mxu0 0
      %1096 = vmatprep.subr.bf16.mxu0 0
      %1097 = vmatpush1.bf16.msra.mxu0 0
      %1098 = vmatprep.mubr.bf16.mxu0 0
      %1099 = vmatmul.mubr.bf16.gmra.mrb[0].mxu0 %v1064
      %v1100 = vpop.f32.mrb[0].mxu0
      %v1101 = vadd.f32 %v1036, %v1100
      %v1102 = vpop.f32.mrb[0].mxu0
      %v1103 = vpop.f32.mrb[0].mxu0
      %v1104 = vpop.f32.mrb[0].mxu0
      %1105 = vdwg.mxu0
      %v1106 = vadd.f32 %v945, %v1101
      %v1107 = vld [vmem:[%s12] sm:$0x1]
      %v1108 = vld [vmem:[%s13] sm:$0x1]
      %v1109 = vsel %vm870, %v1106, 0.0
      %1110 = vadd.xlane.f32.xlu0 %v1109
      %v1111 = vpop.xlane.xlu0 %1110
      %v1112 = vmul.f32 %v1111, %v921
      %v1113 = vsub.f32 %v1106, %v1112
      %v1114 = vmul.f32 %v1113, %v1113
      %v1115 = vsel %vm870, %v1114, 0.0
      %1116 = vadd.xlane.f32.xlu0 %v1115
      %v1117 = vpop.xlane.xlu0 %1116
      %v1118 = vmul.f32 %v1117, %v921
      %v1119 = vadd.f32 %v1118, 1e-12
      %v1120 = vrsqrt.pop %v1119
      %v1121 = vmul.f32 %v1113, %v1120
      %v1123 = vlaneseq
      %v1124 = vshrl.u32 %v1123, 7
      %v1125 = vsub.s32 0, %v1124
      %v1126 = vrot.slane %v1107, %v1125
      %v1128 = vmul.f32 %v1121, %v1126
      %v1130 = vlaneseq
      %v1131 = vshrl.u32 %v1130, 7
      %v1132 = vsub.s32 0, %v1131
      %v1133 = vrot.slane %v1108, %v1132
      %v1135 = vadd.f32 %v1128, %v1133
      %v1136 = vpack.c.bf16 %v1135, %v1135
      %vm1137 = vcmask 257024
      %1138 = vst.msk [vmem:[%s496] sm:$0xf] %vm1137, %v1136
      %p1139 = scmp.lt.s32.totalorder %s29, 1
      %s1140 = scalar_select %p1139, %s29, 1
      %p1141 = scmp.lt.s32.totalorder %s30, 0
      %s1142 = scalar_select %p1141, %s30, 0
      %s1143 = sadd.s32 %s1142, %s1140
      %s1144 = smul.addr %s1143, 4
      %s1145 = scalar_lea.vmem %s14, %s1144
      // Predicated region
      $region81: #{dual_encoder_forward.2} parent=75 // pred_check
        %p1146 = pneg %p361
      $region82: #{dual_encoder_forward.2} parent=75 // pred_check_branch
        %1148 = sbr.rel (%p1146) target = $region84
      $region83: #{dual_encoder_forward.2} parent=75 // pred_region
        _
      $region84: #{dual_encoder_forward.2} parent=75 // pred_fallthru
        _
    $region76: #{dual_encoder_forward.2} parent=5 // pred_fallthru
      _
    %p1149 = scmp.le.s32.totalorder 2, %s20
    // Predicated region
    $region85: #{dual_encoder_forward.2} parent=5 // pred_check
      %p1150 = pneg %p1149
    $region86: #{dual_encoder_forward.2} parent=5 // pred_check_branch
      %1152 = sbr.rel (%p1150) target = $region88
    $region87: #{dual_encoder_forward.2} parent=5 // pred_region
      %s1153 = ssub.s32 %s20, 2
      // Predicated region
      $region89: #{dual_encoder_forward.2} parent=87 // pred_check
        %p1154 = pneg %p367
      $region90: #{dual_encoder_forward.2} parent=87 // pred_check_branch
        %1156 = sbr.rel (%p1154) target = $region92
      $region91: #{dual_encoder_forward.2} parent=87 // pred_region
        %p1157 = scmp.lt.s32.totalorder %s31, 1
        %s1158 = scalar_select %p1157, %s31, 1
        %p1159 = scmp.lt.s32.totalorder %s32, 0
        %s1160 = scalar_select %p1159, %s32, 0
        %s1161 = sadd.s32 %s1160, %s1158
        %s1162 = smul.addr %s1161, 4
        %s1163 = scalar_lea.vmem %s14, %s1162
      $region92: #{dual_encoder_forward.2} parent=87 // pred_fallthru
        _
    $region88: #{dual_encoder_forward.2} parent=5 // pred_fallthru
      _
  $region6: #{dual_encoder_forward.2} parent=0 // loop_footer
    %s24 = sadd.s32 1, %s20
  $region7: #{dual_encoder_forward.2} parent=0 // loop_footer_branch
    %19 = sbr.rel target = $region3
  $region8: #{dual_encoder_forward.2} parent=0 // loop_exit
    _

</llo_original>
